<compile_context>
chip_gen: v5e
topology: v5e:2x2
jax: 0.10.0
libtpu: 0.0.40
codegen_flags: <defaults>
</compile_context>

<pallas_src>
import functools

import jax
import jax.numpy as jnp
from jax.experimental import pallas as pl
from jax.experimental.pallas import tpu as pltpu

EPS = 1e-12  # BERT LayerNorm eps


# ---------------------------------------------------------------- helpers ---
def _layernorm(x, gamma, beta):
    mean = jnp.mean(x, axis=-1, keepdims=True)
    var = jnp.mean((x - mean) ** 2, axis=-1, keepdims=True)
    return (x - mean) * jax.lax.rsqrt(var + EPS) * gamma + beta


def _gelu(x):
    # tanh approximation (HF BERT uses exact erf GELU; deviation ~1e-3).
    return 0.5 * x * (1.0 + jnp.tanh(0.7978845608028654 * (x + 0.044715 * x * x * x)))


def _dense(x, w_bf16, bias):
    # y = x @ W + b with W pre-transposed to [in, out]; bf16 operands, f32 acc.
    return jax.lax.dot_general(
        x.astype(jnp.bfloat16), w_bf16,
        dimension_numbers=(((1,), (0,)), ((), ())),
        preferred_element_type=jnp.float32) + bias


# ----------------------------------------------------------------- kernel ---
def bert_encoder_kernel(x_ref, eg_ref, eb_ref,
                        wqkv_ref, bqkv_ref, wo_ref, bo_ref, ln1g_ref, ln1b_ref,
                        w1_ref, b1_ref, w2_ref, b2_ref, ln2g_ref, ln2b_ref,
                        o_ref, ctx_ref, h_ref, *, batch, seq, num_heads):
    layer = pl.program_id(0)
    H = o_ref.shape[-1]
    dh = H // num_heads
    scale = 1.0 / float(dh) ** 0.5

    # Layer 0: embedding LayerNorm seeds the VMEM-resident carry.
    @pl.when(layer == 0)
    def _():
        h_ref[...] = _layernorm(x_ref[...], eg_ref[...], eb_ref[...])

    x = h_ref[...]                                   # [B*S, H] f32 carry

    # Fused QKV projection: one [B*S, H] x [H, 3H] MXU matmul.
    qkv = _dense(x, wqkv_ref[0], bqkv_ref[0])        # [B*S, 3H]
    q = qkv[:, 0 * H:1 * H] * scale                  # fold 1/sqrt(dh) into q
    k = qkv[:, 1 * H:2 * H]
    v = qkv[:, 2 * H:3 * H]

    # Self-attention: per-(batch, head) 2-D dots; ctx written into VMEM scratch.
    for b in range(batch):                           # static unroll (tiny)
        r = slice(b * seq, (b + 1) * seq)
        for h in range(num_heads):
            c = slice(h * dh, (h + 1) * dh)
            qh = q[r, c].astype(jnp.bfloat16)        # [S, dh]
            kh = k[r, c].astype(jnp.bfloat16)
            vh = v[r, c].astype(jnp.bfloat16)
            s = jax.lax.dot_general(                 # q @ k^T -> [S, S]
                qh, kh, dimension_numbers=(((1,), (1,)), ((), ())),
                preferred_element_type=jnp.float32)
            s = s - jnp.max(s, axis=-1, keepdims=True)
            p = jnp.exp(s)
            p = p * pl.reciprocal(jnp.sum(p, axis=-1, keepdims=True), approx=True)
            ctx_ref[r, c] = jax.lax.dot_general(     # p @ v -> [S, dh]
                p.astype(jnp.bfloat16), vh,
                dimension_numbers=(((1,), (0,)), ((), ())),
                preferred_element_type=jnp.float32)

    attn_out = _dense(ctx_ref[...], wo_ref[0], bo_ref[0])
    x1 = _layernorm(x + attn_out, ln1g_ref[0], ln1b_ref[0])

    ffn = _gelu(_dense(x1, w1_ref[0], b1_ref[0]))
    ffn_out = _dense(ffn, w2_ref[0], b2_ref[0])
    x2 = _layernorm(x1 + ffn_out, ln2g_ref[0], ln2b_ref[0])

    h_ref[...] = x2                                  # carry to next layer
    o_ref[...] = x2                                  # resident output block


# ---------------------------------------------------------------- wrapper ---
_STACKED = ("wqkv", "bqkv", "wo", "bo", "ln1g", "ln1b",
            "w1", "b1", "w2", "b2", "ln2g", "ln2b")


def bert_encoder(emb, params, num_heads):
    B, S, H = emb.shape
    L = params["wqkv"].shape[0]
    x2d = emb.reshape(B * S, H).astype(jnp.float32)  # flatten rows (free, XLA side)

    stacked = [params[k] for k in _STACKED]

    def layer_spec(arr):
        return pl.BlockSpec((1,) + arr.shape[1:], lambda l: (l, 0, 0))

    in_specs = ([pl.BlockSpec((B * S, H), lambda l: (0, 0)),   # embeddings (used at l==0)
                 pl.BlockSpec((1, H), lambda l: (0, 0)),       # emb LN gamma
                 pl.BlockSpec((1, H), lambda l: (0, 0))]       # emb LN beta
                + [layer_spec(a) for a in stacked])

    out = pl.pallas_call(
        functools.partial(bert_encoder_kernel, batch=B, seq=S, num_heads=num_heads),
        out_shape=jax.ShapeDtypeStruct((B * S, H), jnp.float32),
        grid=(L,),
        in_specs=in_specs,
        out_specs=pl.BlockSpec((B * S, H), lambda l: (0, 0)),
        scratch_shapes=[pltpu.VMEM((B * S, H), jnp.float32),   # ctx scratch
                        pltpu.VMEM((B * S, H), jnp.float32)],  # hidden-state carry
        compiler_params=pltpu.CompilerParams(
            dimension_semantics=("arbitrary",)),
    )(x2d, params["emb_ln_g"], params["emb_ln_b"], *stacked)
    return out.reshape(B, S, H)


# ------------------------------------------------------------------ params --
def init_params(key, vocab, hidden, num_layers, num_heads, intermediate,
                max_pos, type_vocab=2):
    std = 0.02
    keys = iter(jax.random.split(key, 3 + 4 * num_layers))

    def nrm(shape):
        return (std * jax.random.normal(next(keys), shape)).astype(jnp.float32)

    params = {
        "word_emb": nrm((vocab, hidden)),
        "pos_emb": nrm((max_pos, hidden)),
        "type_emb": nrm((type_vocab, hidden)),
        "emb_ln_g": jnp.ones((1, hidden), jnp.float32),
        "emb_ln_b": jnp.zeros((1, hidden), jnp.float32),
    }

    per_layer = {k: [] for k in _STACKED}
    for _ in range(num_layers):
        per_layer["wqkv"].append(nrm((hidden, 3 * hidden)))   # [in, out], fused Q|K|V
        per_layer["bqkv"].append(jnp.zeros((1, 3 * hidden), jnp.float32))
        per_layer["wo"].append(nrm((hidden, hidden)))          # [in, out]
        per_layer["bo"].append(jnp.zeros((1, hidden), jnp.float32))
        per_layer["ln1g"].append(jnp.ones((1, hidden), jnp.float32))
        per_layer["ln1b"].append(jnp.zeros((1, hidden), jnp.float32))
        per_layer["w1"].append(nrm((hidden, intermediate)))    # [in, out]
        per_layer["b1"].append(jnp.zeros((1, intermediate), jnp.float32))
        per_layer["w2"].append(nrm((intermediate, hidden)))    # [in, out]
        per_layer["b2"].append(jnp.zeros((1, hidden), jnp.float32))
        per_layer["ln2g"].append(jnp.ones((1, hidden), jnp.float32))
        per_layer["ln2b"].append(jnp.zeros((1, hidden), jnp.float32))

    for k, arrs in per_layer.items():
        stacked = jnp.stack(arrs, axis=0)
        if k in ("wqkv", "wo", "w1", "w2"):
            stacked = stacked.astype(jnp.bfloat16)             # bf16 weight streaming
        params[k] = stacked
    return params


# ----------------------------------------------------------------- forward --
def bert_forward(token_ids, params, num_heads):
    """Bert.forward: BertModel(x) -> last encoder hidden states [B, S, H]."""
    B, S = token_ids.shape
    # Embedding gathers are glue (plain JAX); all heavy compute is in the single
    # fused Pallas encoder kernel.  Matches BertModel(input_ids) defaults:
    # token_type_ids == 0 everywhere (type_emb[0]) and all-ones attention mask
    # (masking is a no-op with no padding), dropout is identity at eval.
    emb = (params["word_emb"][token_ids]
           + params["pos_emb"][:S][None, :, :]
           + params["type_emb"][0][None, None, :])
    return bert_encoder(emb, params, num_heads)


# -------------------------------------------------------------------- main --
if __name__ == "__main__":
    B, S, H = 2, 8, 32
    NUM_HEADS, NUM_LAYERS, INTERMEDIATE = 2, 2, 64
    VOCAB, MAX_POS = 100, 16

    key = jax.random.PRNGKey(0)
    k_params, k_ids = jax.random.split(key)
    params = init_params(k_params, VOCAB, H, NUM_LAYERS, NUM_HEADS,
                         INTERMEDIATE, MAX_POS)
    token_ids = jax.random.randint(k_ids, (B, S), 0, VOCAB, dtype=jnp.int32)

    out = bert_forward(token_ids, params, NUM_HEADS)
    out = jax.block_until_ready(out)
    assert out.shape == (B, S, H) and out.dtype == jnp.float32
    assert bool(jnp.isfinite(out).all())
    print("KERNEL_OK")
</pallas_src>

<mosaic_0001>
module attributes {stable_mosaic.version = 11 : i64} {
  func.func @bert_encoder_kernel(%arg0: i32, %arg1: memref<16x32xf32, #tpu.memory_space<vmem>>, %arg2: memref<1x32xf32, #tpu.memory_space<vmem>>, %arg3: memref<1x32xf32, #tpu.memory_space<vmem>>, %arg4: memref<1x32x96xbf16, #tpu.memory_space<vmem>>, %arg5: memref<1x1x96xf32, #tpu.memory_space<vmem>>, %arg6: memref<1x32x32xbf16, #tpu.memory_space<vmem>>, %arg7: memref<1x1x32xf32, #tpu.memory_space<vmem>>, %arg8: memref<1x1x32xf32, #tpu.memory_space<vmem>>, %arg9: memref<1x1x32xf32, #tpu.memory_space<vmem>>, %arg10: memref<1x32x64xbf16, #tpu.memory_space<vmem>>, %arg11: memref<1x1x64xf32, #tpu.memory_space<vmem>>, %arg12: memref<1x64x32xbf16, #tpu.memory_space<vmem>>, %arg13: memref<1x1x32xf32, #tpu.memory_space<vmem>>, %arg14: memref<1x1x32xf32, #tpu.memory_space<vmem>>, %arg15: memref<1x1x32xf32, #tpu.memory_space<vmem>>, %arg16: memref<16x32xf32, #tpu.memory_space<vmem>>, %arg17: memref<16x32xf32, #tpu.memory_space<vmem>>, %arg18: memref<16x32xf32, #tpu.memory_space<vmem>>) attributes {dimension_semantics = [#tpu.dimension_semantics<arbitrary>], iteration_bounds = array<i64: 2>, scalar_prefetch = 0 : i64, scratch_operands = 2 : i64, tpu.core_type = #tpu.core_type<tc>, window_params = [{pipeline_mode = #tpu.pipeline_mode<synchronous>, transform_indices = @transform_0, window_bounds = array<i64: 16, 32>}, {pipeline_mode = #tpu.pipeline_mode<synchronous>, transform_indices = @transform_1, window_bounds = array<i64: 1, 32>}, {pipeline_mode = #tpu.pipeline_mode<synchronous>, transform_indices = @transform_2, window_bounds = array<i64: 1, 32>}, {transform_indices = @transform_3, window_bounds = array<i64: 1, 32, 96>}, {transform_indices = @transform_4, window_bounds = array<i64: 1, 1, 96>}, {transform_indices = @transform_5, window_bounds = array<i64: 1, 32, 32>}, {transform_indices = @transform_6, window_bounds = array<i64: 1, 1, 32>}, {transform_indices = @transform_7, window_bounds = array<i64: 1, 1, 32>}, {transform_indices = @transform_8, window_bounds = array<i64: 1, 1, 32>}, {transform_indices = @transform_9, window_bounds = array<i64: 1, 32, 64>}, {transform_indices = @transform_10, window_bounds = array<i64: 1, 1, 64>}, {transform_indices = @transform_11, window_bounds = array<i64: 1, 64, 32>}, {transform_indices = @transform_12, window_bounds = array<i64: 1, 1, 32>}, {transform_indices = @transform_13, window_bounds = array<i64: 1, 1, 32>}, {transform_indices = @transform_14, window_bounds = array<i64: 1, 1, 32>}, {pipeline_mode = #tpu.pipeline_mode<synchronous>, transform_indices = @transform_15, window_bounds = array<i64: 16, 32>}]} {
    %c0_i32 = arith.constant 0 : i32
    %0 = arith.cmpi eq, %arg0, %c0_i32 : i32
    %1 = arith.extui %0 : i1 to i32
    %c0_i32_0 = arith.constant 0 : i32
    %2 = arith.cmpi ne, %1, %c0_i32_0 : i32
    scf.if %2 {
      %c0_84 = arith.constant 0 : index
      %c0_85 = arith.constant 0 : index
      %191 = vector.load %arg1[%c0_84, %c0_85] : memref<16x32xf32, #tpu.memory_space<vmem>>, vector<16x32xf32>
      %c0_86 = arith.constant 0 : index
      %c0_87 = arith.constant 0 : index
      %192 = vector.load %arg2[%c0_86, %c0_87] : memref<1x32xf32, #tpu.memory_space<vmem>>, vector<1x32xf32>
      %c0_88 = arith.constant 0 : index
      %c0_89 = arith.constant 0 : index
      %193 = vector.load %arg3[%c0_88, %c0_89] : memref<1x32xf32, #tpu.memory_space<vmem>>, vector<1x32xf32>
      %cst_90 = arith.constant dense<0.000000e+00> : vector<16xf32>
      %194 = vector.multi_reduction <add>, %191, %cst_90 [1] : vector<16x32xf32> to vector<16xf32>
      %195 = vector.shape_cast %194 : vector<16xf32> to vector<16x1xf32>
      %cst_91 = arith.constant 3.200000e+01 : f32
      %196 = vector.broadcast %cst_91 : f32 to vector<16x1xf32>
      %197 = arith.divf %195, %196 : vector<16x1xf32>
      %198 = vector.broadcast %197 : vector<16x1xf32> to vector<16x32xf32>
      %199 = arith.subf %191, %198 : vector<16x32xf32>
      %200 = arith.mulf %199, %199 : vector<16x32xf32>
      %cst_92 = arith.constant dense<0.000000e+00> : vector<16xf32>
      %201 = vector.multi_reduction <add>, %200, %cst_92 [1] : vector<16x32xf32> to vector<16xf32>
      %202 = vector.shape_cast %201 : vector<16xf32> to vector<16x1xf32>
      %cst_93 = arith.constant 3.200000e+01 : f32
      %203 = vector.broadcast %cst_93 : f32 to vector<16x1xf32>
      %204 = arith.divf %202, %203 : vector<16x1xf32>
      %205 = vector.broadcast %197 : vector<16x1xf32> to vector<16x32xf32>
      %206 = arith.subf %191, %205 : vector<16x32xf32>
      %cst_94 = arith.constant 9.99999996E-13 : f32
      %207 = vector.broadcast %cst_94 : f32 to vector<16x1xf32>
      %208 = arith.addf %204, %207 : vector<16x1xf32>
      %209 = math.rsqrt %208 : vector<16x1xf32>
      %210 = vector.broadcast %209 : vector<16x1xf32> to vector<16x32xf32>
      %211 = arith.mulf %206, %210 : vector<16x32xf32>
      %212 = vector.broadcast %192 : vector<1x32xf32> to vector<16x32xf32>
      %213 = arith.mulf %211, %212 : vector<16x32xf32>
      %214 = vector.broadcast %193 : vector<1x32xf32> to vector<16x32xf32>
      %215 = arith.addf %213, %214 : vector<16x32xf32>
      %c0_95 = arith.constant 0 : index
      %c0_96 = arith.constant 0 : index
      %216 = vector.load %arg18[%c0_95, %c0_96] : memref<16x32xf32, #tpu.memory_space<vmem>>, vector<16x32xf32>
      tpu.vector_store %arg18[%c0_95, %c0_96], %215 {strides = array<i32>} : memref<16x32xf32, #tpu.memory_space<vmem>>, vector<16x32xf32>,
    } else {
    }
    %c0 = arith.constant 0 : index
    %c0_1 = arith.constant 0 : index
    %3 = vector.load %arg18[%c0, %c0_1] : memref<16x32xf32, #tpu.memory_space<vmem>>, vector<16x32xf32>
    %c0_2 = arith.constant 0 : index
    %c0_3 = arith.constant 0 : index
    %c0_4 = arith.constant 0 : index
    %4 = vector.load %arg4[%c0_2, %c0_3, %c0_4] : memref<1x32x96xbf16, #tpu.memory_space<vmem>>, vector<1x32x96xbf16>
    %5 = vector.shape_cast %4 : vector<1x32x96xbf16> to vector<32x96xbf16>
    %c0_5 = arith.constant 0 : index
    %c0_6 = arith.constant 0 : index
    %c0_7 = arith.constant 0 : index
    %6 = vector.load %arg5[%c0_5, %c0_6, %c0_7] : memref<1x1x96xf32, #tpu.memory_space<vmem>>, vector<1x1x96xf32>
    %7 = vector.shape_cast %6 : vector<1x1x96xf32> to vector<1x96xf32>
    %8 = arith.truncf %3 : vector<16x32xf32> to vector<16x32xbf16>
    %cst = arith.constant dense<0.000000e+00> : vector<16x96xf32>
    %9 = tpu.matmul %8, %5, %cst {dimension_numbers = #tpu.dot_dimension_numbers<[1], [0], [0], [1], [0, 0, 1, 1], [], []>} : vector<16x32xbf16>, vector<32x96xbf16>, vector<16x96xf32> -> vector<16x96xf32>
    %10 = vector.broadcast %7 : vector<1x96xf32> to vector<16x96xf32>
    %11 = arith.addf %9, %10 : vector<16x96xf32>
    %12 = vector.extract_strided_slice %11 {offsets = [0, 0], sizes = [16, 32], strides = [1, 1]} : vector<16x96xf32> to vector<16x32xf32>
    %cst_8 = arith.constant 2.500000e-01 : f32
    %13 = vector.broadcast %cst_8 : f32 to vector<16x32xf32>
    %14 = arith.mulf %12, %13 : vector<16x32xf32>
    %15 = vector.extract_strided_slice %11 {offsets = [0, 32], sizes = [16, 32], strides = [1, 1]} : vector<16x96xf32> to vector<16x32xf32>
    %16 = vector.extract_strided_slice %11 {offsets = [0, 64], sizes = [16, 32], strides = [1, 1]} : vector<16x96xf32> to vector<16x32xf32>
    %17 = vector.extract_strided_slice %14 {offsets = [0, 0], sizes = [8, 16], strides = [1, 1]} : vector<16x32xf32> to vector<8x16xf32>
    %18 = arith.truncf %17 : vector<8x16xf32> to vector<8x16xbf16>
    %19 = vector.extract_strided_slice %15 {offsets = [0, 0], sizes = [8, 16], strides = [1, 1]} : vector<16x32xf32> to vector<8x16xf32>
    %20 = arith.truncf %19 : vector<8x16xf32> to vector<8x16xbf16>
    %21 = vector.extract_strided_slice %16 {offsets = [0, 0], sizes = [8, 16], strides = [1, 1]} : vector<16x32xf32> to vector<8x16xf32>
    %22 = arith.truncf %21 : vector<8x16xf32> to vector<8x16xbf16>
    %cst_9 = arith.constant dense<0.000000e+00> : vector<8x8xf32>
    %23 = tpu.matmul %18, %20, %cst_9 {dimension_numbers = #tpu.dot_dimension_numbers<[1], [1], [0], [0], [0, 0, 1, 0], [], []>} : vector<8x16xbf16>, vector<8x16xbf16>, vector<8x8xf32> -> vector<8x8xf32>
    %cst_10 = arith.constant dense<0xFF800000> : vector<8xf32>
    %24 = vector.multi_reduction <maximumf>, %23, %cst_10 [1] : vector<8x8xf32> to vector<8xf32>
    %25 = vector.shape_cast %24 : vector<8xf32> to vector<8x1xf32>
    %26 = vector.broadcast %25 : vector<8x1xf32> to vector<8x8xf32>
    %27 = arith.subf %23, %26 : vector<8x8xf32>
    %28 = math.exp %27 : vector<8x8xf32>
    %cst_11 = arith.constant dense<0.000000e+00> : vector<8xf32>
    %29 = vector.multi_reduction <add>, %28, %cst_11 [1] : vector<8x8xf32> to vector<8xf32>
    %30 = vector.shape_cast %29 : vector<8xf32> to vector<8x1xf32>
    %31 = tpu.reciprocal %30 {approx = true} : vector<8x1xf32> -> vector<8x1xf32>
    %32 = vector.broadcast %31 : vector<8x1xf32> to vector<8x8xf32>
    %33 = arith.mulf %28, %32 : vector<8x8xf32>
    %34 = arith.truncf %33 : vector<8x8xf32> to vector<8x8xbf16>
    %cst_12 = arith.constant dense<0.000000e+00> : vector<8x16xf32>
    %35 = tpu.matmul %34, %22, %cst_12 {dimension_numbers = #tpu.dot_dimension_numbers<[1], [0], [0], [1], [0, 0, 1, 1], [], []>} : vector<8x8xbf16>, vector<8x16xbf16>, vector<8x16xf32> -> vector<8x16xf32>
    %c0_13 = arith.constant 0 : index
    %c0_14 = arith.constant 0 : index
    %36 = vector.load %arg17[%c0_13, %c0_14] : memref<16x32xf32, #tpu.memory_space<vmem>>, vector<8x16xf32>
    tpu.vector_store %arg17[%c0_13, %c0_14], %35 {strides = array<i32>} : memref<16x32xf32, #tpu.memory_space<vmem>>, vector<8x16xf32>,
    %37 = vector.extract_strided_slice %14 {offsets = [0, 16], sizes = [8, 16], strides = [1, 1]} : vector<16x32xf32> to vector<8x16xf32>
    %38 = arith.truncf %37 : vector<8x16xf32> to vector<8x16xbf16>
    %39 = vector.extract_strided_slice %15 {offsets = [0, 16], sizes = [8, 16], strides = [1, 1]} : vector<16x32xf32> to vector<8x16xf32>
    %40 = arith.truncf %39 : vector<8x16xf32> to vector<8x16xbf16>
    %41 = vector.extract_strided_slice %16 {offsets = [0, 16], sizes = [8, 16], strides = [1, 1]} : vector<16x32xf32> to vector<8x16xf32>
    %42 = arith.truncf %41 : vector<8x16xf32> to vector<8x16xbf16>
    %cst_15 = arith.constant dense<0.000000e+00> : vector<8x8xf32>
    %43 = tpu.matmul %38, %40, %cst_15 {dimension_numbers = #tpu.dot_dimension_numbers<[1], [1], [0], [0], [0, 0, 1, 0], [], []>} : vector<8x16xbf16>, vector<8x16xbf16>, vector<8x8xf32> -> vector<8x8xf32>
    %cst_16 = arith.constant dense<0xFF800000> : vector<8xf32>
    %44 = vector.multi_reduction <maximumf>, %43, %cst_16 [1] : vector<8x8xf32> to vector<8xf32>
    %45 = vector.shape_cast %44 : vector<8xf32> to vector<8x1xf32>
    %46 = vector.broadcast %45 : vector<8x1xf32> to vector<8x8xf32>
    %47 = arith.subf %43, %46 : vector<8x8xf32>
    %48 = math.exp %47 : vector<8x8xf32>
    %cst_17 = arith.constant dense<0.000000e+00> : vector<8xf32>
    %49 = vector.multi_reduction <add>, %48, %cst_17 [1] : vector<8x8xf32> to vector<8xf32>
    %50 = vector.shape_cast %49 : vector<8xf32> to vector<8x1xf32>
    %51 = tpu.reciprocal %50 {approx = true} : vector<8x1xf32> -> vector<8x1xf32>
    %52 = vector.broadcast %51 : vector<8x1xf32> to vector<8x8xf32>
    %53 = arith.mulf %48, %52 : vector<8x8xf32>
    %54 = arith.truncf %53 : vector<8x8xf32> to vector<8x8xbf16>
    %cst_18 = arith.constant dense<0.000000e+00> : vector<8x16xf32>
    %55 = tpu.matmul %54, %42, %cst_18 {dimension_numbers = #tpu.dot_dimension_numbers<[1], [0], [0], [1], [0, 0, 1, 1], [], []>} : vector<8x8xbf16>, vector<8x16xbf16>, vector<8x16xf32> -> vector<8x16xf32>
    %c0_19 = arith.constant 0 : index
    %c16 = arith.constant 16 : index
    %56 = vector.load %arg17[%c0_19, %c16] : memref<16x32xf32, #tpu.memory_space<vmem>>, vector<8x16xf32>
    tpu.vector_store %arg17[%c0_19, %c16], %55 {strides = array<i32>} : memref<16x32xf32, #tpu.memory_space<vmem>>, vector<8x16xf32>,
    %57 = vector.extract_strided_slice %14 {offsets = [8, 0], sizes = [8, 16], strides = [1, 1]} : vector<16x32xf32> to vector<8x16xf32>
    %58 = arith.truncf %57 : vector<8x16xf32> to vector<8x16xbf16>
    %59 = vector.extract_strided_slice %15 {offsets = [8, 0], sizes = [8, 16], strides = [1, 1]} : vector<16x32xf32> to vector<8x16xf32>
    %60 = arith.truncf %59 : vector<8x16xf32> to vector<8x16xbf16>
    %61 = vector.extract_strided_slice %16 {offsets = [8, 0], sizes = [8, 16], strides = [1, 1]} : vector<16x32xf32> to vector<8x16xf32>
    %62 = arith.truncf %61 : vector<8x16xf32> to vector<8x16xbf16>
    %cst_20 = arith.constant dense<0.000000e+00> : vector<8x8xf32>
    %63 = tpu.matmul %58, %60, %cst_20 {dimension_numbers = #tpu.dot_dimension_numbers<[1], [1], [0], [0], [0, 0, 1, 0], [], []>} : vector<8x16xbf16>, vector<8x16xbf16>, vector<8x8xf32> -> vector<8x8xf32>
    %cst_21 = arith.constant dense<0xFF800000> : vector<8xf32>
    %64 = vector.multi_reduction <maximumf>, %63, %cst_21 [1] : vector<8x8xf32> to vector<8xf32>
    %65 = vector.shape_cast %64 : vector<8xf32> to vector<8x1xf32>
    %66 = vector.broadcast %65 : vector<8x1xf32> to vector<8x8xf32>
    %67 = arith.subf %63, %66 : vector<8x8xf32>
    %68 = math.exp %67 : vector<8x8xf32>
    %cst_22 = arith.constant dense<0.000000e+00> : vector<8xf32>
    %69 = vector.multi_reduction <add>, %68, %cst_22 [1] : vector<8x8xf32> to vector<8xf32>
    %70 = vector.shape_cast %69 : vector<8xf32> to vector<8x1xf32>
    %71 = tpu.reciprocal %70 {approx = true} : vector<8x1xf32> -> vector<8x1xf32>
    %72 = vector.broadcast %71 : vector<8x1xf32> to vector<8x8xf32>
    %73 = arith.mulf %68, %72 : vector<8x8xf32>
    %74 = arith.truncf %73 : vector<8x8xf32> to vector<8x8xbf16>
    %cst_23 = arith.constant dense<0.000000e+00> : vector<8x16xf32>
    %75 = tpu.matmul %74, %62, %cst_23 {dimension_numbers = #tpu.dot_dimension_numbers<[1], [0], [0], [1], [0, 0, 1, 1], [], []>} : vector<8x8xbf16>, vector<8x16xbf16>, vector<8x16xf32> -> vector<8x16xf32>
    %c8 = arith.constant 8 : index
    %c0_24 = arith.constant 0 : index
    %76 = vector.load %arg17[%c8, %c0_24] : memref<16x32xf32, #tpu.memory_space<vmem>>, vector<8x16xf32>
    tpu.vector_store %arg17[%c8, %c0_24], %75 {strides = array<i32>} : memref<16x32xf32, #tpu.memory_space<vmem>>, vector<8x16xf32>,
    %77 = vector.extract_strided_slice %14 {offsets = [8, 16], sizes = [8, 16], strides = [1, 1]} : vector<16x32xf32> to vector<8x16xf32>
    %78 = arith.truncf %77 : vector<8x16xf32> to vector<8x16xbf16>
    %79 = vector.extract_strided_slice %15 {offsets = [8, 16], sizes = [8, 16], strides = [1, 1]} : vector<16x32xf32> to vector<8x16xf32>
    %80 = arith.truncf %79 : vector<8x16xf32> to vector<8x16xbf16>
    %81 = vector.extract_strided_slice %16 {offsets = [8, 16], sizes = [8, 16], strides = [1, 1]} : vector<16x32xf32> to vector<8x16xf32>
    %82 = arith.truncf %81 : vector<8x16xf32> to vector<8x16xbf16>
    %cst_25 = arith.constant dense<0.000000e+00> : vector<8x8xf32>
    %83 = tpu.matmul %78, %80, %cst_25 {dimension_numbers = #tpu.dot_dimension_numbers<[1], [1], [0], [0], [0, 0, 1, 0], [], []>} : vector<8x16xbf16>, vector<8x16xbf16>, vector<8x8xf32> -> vector<8x8xf32>
    %cst_26 = arith.constant dense<0xFF800000> : vector<8xf32>
    %84 = vector.multi_reduction <maximumf>, %83, %cst_26 [1] : vector<8x8xf32> to vector<8xf32>
    %85 = vector.shape_cast %84 : vector<8xf32> to vector<8x1xf32>
    %86 = vector.broadcast %85 : vector<8x1xf32> to vector<8x8xf32>
    %87 = arith.subf %83, %86 : vector<8x8xf32>
    %88 = math.exp %87 : vector<8x8xf32>
    %cst_27 = arith.constant dense<0.000000e+00> : vector<8xf32>
    %89 = vector.multi_reduction <add>, %88, %cst_27 [1] : vector<8x8xf32> to vector<8xf32>
    %90 = vector.shape_cast %89 : vector<8xf32> to vector<8x1xf32>
    %91 = tpu.reciprocal %90 {approx = true} : vector<8x1xf32> -> vector<8x1xf32>
    %92 = vector.broadcast %91 : vector<8x1xf32> to vector<8x8xf32>
    %93 = arith.mulf %88, %92 : vector<8x8xf32>
    %94 = arith.truncf %93 : vector<8x8xf32> to vector<8x8xbf16>
    %cst_28 = arith.constant dense<0.000000e+00> : vector<8x16xf32>
    %95 = tpu.matmul %94, %82, %cst_28 {dimension_numbers = #tpu.dot_dimension_numbers<[1], [0], [0], [1], [0, 0, 1, 1], [], []>} : vector<8x8xbf16>, vector<8x16xbf16>, vector<8x16xf32> -> vector<8x16xf32>
    %c8_29 = arith.constant 8 : index
    %c16_30 = arith.constant 16 : index
    %96 = vector.load %arg17[%c8_29, %c16_30] : memref<16x32xf32, #tpu.memory_space<vmem>>, vector<8x16xf32>
    tpu.vector_store %arg17[%c8_29, %c16_30], %95 {strides = array<i32>} : memref<16x32xf32, #tpu.memory_space<vmem>>, vector<8x16xf32>,
    %c0_31 = arith.constant 0 : index
    %c0_32 = arith.constant 0 : index
    %97 = vector.load %arg17[%c0_31, %c0_32] : memref<16x32xf32, #tpu.memory_space<vmem>>, vector<16x32xf32>
    %c0_33 = arith.constant 0 : index
    %c0_34 = arith.constant 0 : index
    %c0_35 = arith.constant 0 : index
    %98 = vector.load %arg6[%c0_33, %c0_34, %c0_35] : memref<1x32x32xbf16, #tpu.memory_space<vmem>>, vector<1x32x32xbf16>
    %99 = vector.shape_cast %98 : vector<1x32x32xbf16> to vector<32x32xbf16>
    %c0_36 = arith.constant 0 : index
    %c0_37 = arith.constant 0 : index
    %c0_38 = arith.constant 0 : index
    %100 = vector.load %arg7[%c0_36, %c0_37, %c0_38] : memref<1x1x32xf32, #tpu.memory_space<vmem>>, vector<1x1x32xf32>
    %101 = vector.shape_cast %100 : vector<1x1x32xf32> to vector<1x32xf32>
    %102 = arith.truncf %97 : vector<16x32xf32> to vector<16x32xbf16>
    %cst_39 = arith.constant dense<0.000000e+00> : vector<16x32xf32>
    %103 = tpu.matmul %102, %99, %cst_39 {dimension_numbers = #tpu.dot_dimension_numbers<[1], [0], [0], [1], [0, 0, 1, 1], [], []>} : vector<16x32xbf16>, vector<32x32xbf16>, vector<16x32xf32> -> vector<16x32xf32>
    %104 = vector.broadcast %101 : vector<1x32xf32> to vector<16x32xf32>
    %105 = arith.addf %103, %104 : vector<16x32xf32>
    %106 = arith.addf %3, %105 : vector<16x32xf32>
    %c0_40 = arith.constant 0 : index
    %c0_41 = arith.constant 0 : index
    %c0_42 = arith.constant 0 : index
    %107 = vector.load %arg8[%c0_40, %c0_41, %c0_42] : memref<1x1x32xf32, #tpu.memory_space<vmem>>, vector<1x1x32xf32>
    %108 = vector.shape_cast %107 : vector<1x1x32xf32> to vector<1x32xf32>
    %c0_43 = arith.constant 0 : index
    %c0_44 = arith.constant 0 : index
    %c0_45 = arith.constant 0 : index
    %109 = vector.load %arg9[%c0_43, %c0_44, %c0_45] : memref<1x1x32xf32, #tpu.memory_space<vmem>>, vector<1x1x32xf32>
    %110 = vector.shape_cast %109 : vector<1x1x32xf32> to vector<1x32xf32>
    %cst_46 = arith.constant dense<0.000000e+00> : vector<16xf32>
    %111 = vector.multi_reduction <add>, %106, %cst_46 [1] : vector<16x32xf32> to vector<16xf32>
    %112 = vector.shape_cast %111 : vector<16xf32> to vector<16x1xf32>
    %cst_47 = arith.constant 3.200000e+01 : f32
    %113 = vector.broadcast %cst_47 : f32 to vector<16x1xf32>
    %114 = arith.divf %112, %113 : vector<16x1xf32>
    %115 = vector.broadcast %114 : vector<16x1xf32> to vector<16x32xf32>
    %116 = arith.subf %106, %115 : vector<16x32xf32>
    %117 = arith.mulf %116, %116 : vector<16x32xf32>
    %cst_48 = arith.constant dense<0.000000e+00> : vector<16xf32>
    %118 = vector.multi_reduction <add>, %117, %cst_48 [1] : vector<16x32xf32> to vector<16xf32>
    %119 = vector.shape_cast %118 : vector<16xf32> to vector<16x1xf32>
    %cst_49 = arith.constant 3.200000e+01 : f32
    %120 = vector.broadcast %cst_49 : f32 to vector<16x1xf32>
    %121 = arith.divf %119, %120 : vector<16x1xf32>
    %122 = vector.broadcast %114 : vector<16x1xf32> to vector<16x32xf32>
    %123 = arith.subf %106, %122 : vector<16x32xf32>
    %cst_50 = arith.constant 9.99999996E-13 : f32
    %124 = vector.broadcast %cst_50 : f32 to vector<16x1xf32>
    %125 = arith.addf %121, %124 : vector<16x1xf32>
    %126 = math.rsqrt %125 : vector<16x1xf32>
    %127 = vector.broadcast %126 : vector<16x1xf32> to vector<16x32xf32>
    %128 = arith.mulf %123, %127 : vector<16x32xf32>
    %129 = vector.broadcast %108 : vector<1x32xf32> to vector<16x32xf32>
    %130 = arith.mulf %128, %129 : vector<16x32xf32>
    %131 = vector.broadcast %110 : vector<1x32xf32> to vector<16x32xf32>
    %132 = arith.addf %130, %131 : vector<16x32xf32>
    %c0_51 = arith.constant 0 : index
    %c0_52 = arith.constant 0 : index
    %c0_53 = arith.constant 0 : index
    %133 = vector.load %arg10[%c0_51, %c0_52, %c0_53] : memref<1x32x64xbf16, #tpu.memory_space<vmem>>, vector<1x32x64xbf16>
    %134 = vector.shape_cast %133 : vector<1x32x64xbf16> to vector<32x64xbf16>
    %c0_54 = arith.constant 0 : index
    %c0_55 = arith.constant 0 : index
    %c0_56 = arith.constant 0 : index
    %135 = vector.load %arg11[%c0_54, %c0_55, %c0_56] : memref<1x1x64xf32, #tpu.memory_space<vmem>>, vector<1x1x64xf32>
    %136 = vector.shape_cast %135 : vector<1x1x64xf32> to vector<1x64xf32>
    %137 = arith.truncf %132 : vector<16x32xf32> to vector<16x32xbf16>
    %cst_57 = arith.constant dense<0.000000e+00> : vector<16x64xf32>
    %138 = tpu.matmul %137, %134, %cst_57 {dimension_numbers = #tpu.dot_dimension_numbers<[1], [0], [0], [1], [0, 0, 1, 1], [], []>} : vector<16x32xbf16>, vector<32x64xbf16>, vector<16x64xf32> -> vector<16x64xf32>
    %139 = vector.broadcast %136 : vector<1x64xf32> to vector<16x64xf32>
    %140 = arith.addf %138, %139 : vector<16x64xf32>
    %cst_58 = arith.constant 5.000000e-01 : f32
    %141 = vector.broadcast %cst_58 : f32 to vector<16x64xf32>
    %142 = arith.mulf %141, %140 : vector<16x64xf32>
    %cst_59 = arith.constant 4.471500e-02 : f32
    %143 = vector.broadcast %cst_59 : f32 to vector<16x64xf32>
    %144 = arith.mulf %143, %140 : vector<16x64xf32>
    %145 = arith.mulf %144, %140 : vector<16x64xf32>
    %146 = arith.mulf %145, %140 : vector<16x64xf32>
    %147 = arith.addf %140, %146 : vector<16x64xf32>
    %cst_60 = arith.constant 0.797884583 : f32
    %148 = vector.broadcast %cst_60 : f32 to vector<16x64xf32>
    %149 = arith.mulf %148, %147 : vector<16x64xf32>
    %150 = math.tanh %149 : vector<16x64xf32>
    %cst_61 = arith.constant 1.000000e+00 : f32
    %151 = vector.broadcast %cst_61 : f32 to vector<16x64xf32>
    %152 = arith.addf %151, %150 : vector<16x64xf32>
    %153 = arith.mulf %142, %152 : vector<16x64xf32>
    %c0_62 = arith.constant 0 : index
    %c0_63 = arith.constant 0 : index
    %c0_64 = arith.constant 0 : index
    %154 = vector.load %arg12[%c0_62, %c0_63, %c0_64] : memref<1x64x32xbf16, #tpu.memory_space<vmem>>, vector<1x64x32xbf16>
    %155 = vector.shape_cast %154 : vector<1x64x32xbf16> to vector<64x32xbf16>
    %c0_65 = arith.constant 0 : index
    %c0_66 = arith.constant 0 : index
    %c0_67 = arith.constant 0 : index
    %156 = vector.load %arg13[%c0_65, %c0_66, %c0_67] : memref<1x1x32xf32, #tpu.memory_space<vmem>>, vector<1x1x32xf32>
    %157 = vector.shape_cast %156 : vector<1x1x32xf32> to vector<1x32xf32>
    %158 = arith.truncf %153 : vector<16x64xf32> to vector<16x64xbf16>
    %cst_68 = arith.constant dense<0.000000e+00> : vector<16x32xf32>
    %159 = tpu.matmul %158, %155, %cst_68 {dimension_numbers = #tpu.dot_dimension_numbers<[1], [0], [0], [1], [0, 0, 1, 1], [], []>} : vector<16x64xbf16>, vector<64x32xbf16>, vector<16x32xf32> -> vector<16x32xf32>
    %160 = vector.broadcast %157 : vector<1x32xf32> to vector<16x32xf32>
    %161 = arith.addf %159, %160 : vector<16x32xf32>
    %162 = arith.addf %132, %161 : vector<16x32xf32>
    %c0_69 = arith.constant 0 : index
    %c0_70 = arith.constant 0 : index
    %c0_71 = arith.constant 0 : index
    %163 = vector.load %arg14[%c0_69, %c0_70, %c0_71] : memref<1x1x32xf32, #tpu.memory_space<vmem>>, vector<1x1x32xf32>
    %164 = vector.shape_cast %163 : vector<1x1x32xf32> to vector<1x32xf32>
    %c0_72 = arith.constant 0 : index
    %c0_73 = arith.constant 0 : index
    %c0_74 = arith.constant 0 : index
    %165 = vector.load %arg15[%c0_72, %c0_73, %c0_74] : memref<1x1x32xf32, #tpu.memory_space<vmem>>, vector<1x1x32xf32>
    %166 = vector.shape_cast %165 : vector<1x1x32xf32> to vector<1x32xf32>
    %cst_75 = arith.constant dense<0.000000e+00> : vector<16xf32>
    %167 = vector.multi_reduction <add>, %162, %cst_75 [1] : vector<16x32xf32> to vector<16xf32>
    %168 = vector.shape_cast %167 : vector<16xf32> to vector<16x1xf32>
    %cst_76 = arith.constant 3.200000e+01 : f32
    %169 = vector.broadcast %cst_76 : f32 to vector<16x1xf32>
    %170 = arith.divf %168, %169 : vector<16x1xf32>
    %171 = vector.broadcast %170 : vector<16x1xf32> to vector<16x32xf32>
    %172 = arith.subf %162, %171 : vector<16x32xf32>
    %173 = arith.mulf %172, %172 : vector<16x32xf32>
    %cst_77 = arith.constant dense<0.000000e+00> : vector<16xf32>
    %174 = vector.multi_reduction <add>, %173, %cst_77 [1] : vector<16x32xf32> to vector<16xf32>
    %175 = vector.shape_cast %174 : vector<16xf32> to vector<16x1xf32>
    %cst_78 = arith.constant 3.200000e+01 : f32
    %176 = vector.broadcast %cst_78 : f32 to vector<16x1xf32>
    %177 = arith.divf %175, %176 : vector<16x1xf32>
    %178 = vector.broadcast %170 : vector<16x1xf32> to vector<16x32xf32>
    %179 = arith.subf %162, %178 : vector<16x32xf32>
    %cst_79 = arith.constant 9.99999996E-13 : f32
    %180 = vector.broadcast %cst_79 : f32 to vector<16x1xf32>
    %181 = arith.addf %177, %180 : vector<16x1xf32>
    %182 = math.rsqrt %181 : vector<16x1xf32>
    %183 = vector.broadcast %182 : vector<16x1xf32> to vector<16x32xf32>
    %184 = arith.mulf %179, %183 : vector<16x32xf32>
    %185 = vector.broadcast %164 : vector<1x32xf32> to vector<16x32xf32>
    %186 = arith.mulf %184, %185 : vector<16x32xf32>
    %187 = vector.broadcast %166 : vector<1x32xf32> to vector<16x32xf32>
    %188 = arith.addf %186, %187 : vector<16x32xf32>
    %c0_80 = arith.constant 0 : index
    %c0_81 = arith.constant 0 : index
    %189 = vector.load %arg18[%c0_80, %c0_81] : memref<16x32xf32, #tpu.memory_space<vmem>>, vector<16x32xf32>
    tpu.vector_store %arg18[%c0_80, %c0_81], %188 {strides = array<i32>} : memref<16x32xf32, #tpu.memory_space<vmem>>, vector<16x32xf32>,
    %c0_82 = arith.constant 0 : index
    %c0_83 = arith.constant 0 : index
    %190 = vector.load %arg16[%c0_82, %c0_83] : memref<16x32xf32, #tpu.memory_space<vmem>>, vector<16x32xf32>
    tpu.vector_store %arg16[%c0_82, %c0_83], %188 {strides = array<i32>} : memref<16x32xf32, #tpu.memory_space<vmem>>, vector<16x32xf32>,
    return
  }
  func.func @transform_0(%arg0: i32) -> (i32, i32) {
    %c0_i32 = arith.constant 0 : i32
    %c0_i32_0 = arith.constant 0 : i32
    %c0_i32_1 = arith.constant 0 : i32
    return %c0_i32, %c0_i32_0 : i32, i32
  }
  func.func @transform_1(%arg0: i32) -> (i32, i32) {
    %c0_i32 = arith.constant 0 : i32
    %c0_i32_0 = arith.constant 0 : i32
    %c0_i32_1 = arith.constant 0 : i32
    return %c0_i32, %c0_i32_0 : i32, i32
  }
  func.func @transform_2(%arg0: i32) -> (i32, i32) {
    %c0_i32 = arith.constant 0 : i32
    %c0_i32_0 = arith.constant 0 : i32
    %c0_i32_1 = arith.constant 0 : i32
    return %c0_i32, %c0_i32_0 : i32, i32
  }
  func.func @transform_3(%arg0: i32) -> (i32, i32, i32) {
    %c0_i32 = arith.constant 0 : i32
    %c0_i32_0 = arith.constant 0 : i32
    %c0_i32_1 = arith.constant 0 : i32
    return %arg0, %c0_i32, %c0_i32_0 : i32, i32, i32
  }
  func.func @transform_4(%arg0: i32) -> (i32, i32, i32) {
    %c0_i32 = arith.constant 0 : i32
    %c0_i32_0 = arith.constant 0 : i32
    %c0_i32_1 = arith.constant 0 : i32
    return %arg0, %c0_i32, %c0_i32_0 : i32, i32, i32
  }
  func.func @transform_5(%arg0: i32) -> (i32, i32, i32) {
    %c0_i32 = arith.constant 0 : i32
    %c0_i32_0 = arith.constant 0 : i32
    %c0_i32_1 = arith.constant 0 : i32
    return %arg0, %c0_i32, %c0_i32_0 : i32, i32, i32
  }
  func.func @transform_6(%arg0: i32) -> (i32, i32, i32) {
    %c0_i32 = arith.constant 0 : i32
    %c0_i32_0 = arith.constant 0 : i32
    %c0_i32_1 = arith.constant 0 : i32
    return %arg0, %c0_i32, %c0_i32_0 : i32, i32, i32
  }
  func.func @transform_7(%arg0: i32) -> (i32, i32, i32) {
    %c0_i32 = arith.constant 0 : i32
    %c0_i32_0 = arith.constant 0 : i32
    %c0_i32_1 = arith.constant 0 : i32
    return %arg0, %c0_i32, %c0_i32_0 : i32, i32, i32
  }
  func.func @transform_8(%arg0: i32) -> (i32, i32, i32) {
    %c0_i32 = arith.constant 0 : i32
    %c0_i32_0 = arith.constant 0 : i32
    %c0_i32_1 = arith.constant 0 : i32
    return %arg0, %c0_i32, %c0_i32_0 : i32, i32, i32
  }
  func.func @transform_9(%arg0: i32) -> (i32, i32, i32) {
    %c0_i32 = arith.constant 0 : i32
    %c0_i32_0 = arith.constant 0 : i32
    %c0_i32_1 = arith.constant 0 : i32
    return %arg0, %c0_i32, %c0_i32_0 : i32, i32, i32
  }
  func.func @transform_10(%arg0: i32) -> (i32, i32, i32) {
    %c0_i32 = arith.constant 0 : i32
    %c0_i32_0 = arith.constant 0 : i32
    %c0_i32_1 = arith.constant 0 : i32
    return %arg0, %c0_i32, %c0_i32_0 : i32, i32, i32
  }
  func.func @transform_11(%arg0: i32) -> (i32, i32, i32) {
    %c0_i32 = arith.constant 0 : i32
    %c0_i32_0 = arith.constant 0 : i32
    %c0_i32_1 = arith.constant 0 : i32
    return %arg0, %c0_i32, %c0_i32_0 : i32, i32, i32
  }
  func.func @transform_12(%arg0: i32) -> (i32, i32, i32) {
    %c0_i32 = arith.constant 0 : i32
    %c0_i32_0 = arith.constant 0 : i32
    %c0_i32_1 = arith.constant 0 : i32
    return %arg0, %c0_i32, %c0_i32_0 : i32, i32, i32
  }
  func.func @transform_13(%arg0: i32) -> (i32, i32, i32) {
    %c0_i32 = arith.constant 0 : i32
    %c0_i32_0 = arith.constant 0 : i32
    %c0_i32_1 = arith.constant 0 : i32
    return %arg0, %c0_i32, %c0_i32_0 : i32, i32, i32
  }
  func.func @transform_14(%arg0: i32) -> (i32, i32, i32) {
    %c0_i32 = arith.constant 0 : i32
    %c0_i32_0 = arith.constant 0 : i32
    %c0_i32_1 = arith.constant 0 : i32
    return %arg0, %c0_i32, %c0_i32_0 : i32, i32, i32
  }
  func.func @transform_15(%arg0: i32) -> (i32, i32) {
    %c0_i32 = arith.constant 0 : i32
    %c0_i32_0 = arith.constant 0 : i32
    %c0_i32_1 = arith.constant 0 : i32
    return %c0_i32, %c0_i32_0 : i32, i32
  }
}

</mosaic_0001>

<llo_original>
// kernel: tpu_custom_call.1
$region0: #{tpu_custom_call.1}
  #allocation0 [shape = 'u32[]', space=smem, size = 0x4, offset = 0x4, fixed_abs, tag = 'smem constant byte address 0x4 - core index']
  #allocation1 [shape = 'u32[72,128]{1,0:T(1,128)}', space=vmem, size = 0x9000, scoped, tag = 'internal scratch']
  #allocation2 [shape = 'f32[16,32]{1,0:T(8,128)}', space=vmem, size = 0x2000, scoped, tag = 'scratch operand']
  #allocation3 [shape = 'f32[16,32]{1,0:T(8,128)}', space=vmem, size = 0x2000, scoped, tag = 'scratch operand']
  %s0 = inlined_call_operand.hbm [shape: f32[16,32], index: 0, kind: input, shape index: {}]
  %s1 = inlined_call_operand.hbm [shape: f32[1,32], index: 1, kind: input, shape index: {}]
  %s2 = inlined_call_operand.vmem [shape: f32[1,32], index: 2, kind: input, shape index: {}]
  %s3 = inlined_call_operand.vmem [shape: bf16[2,32,96], index: 3, kind: input, shape index: {}]
  %s4 = inlined_call_operand.vmem [shape: f32[2,1,96], index: 4, kind: input, shape index: {}]
  %s5 = inlined_call_operand.vmem [shape: bf16[2,32,32], index: 5, kind: input, shape index: {}]
  %s6 = inlined_call_operand.vmem [shape: f32[2,1,32], index: 6, kind: input, shape index: {}]
  %s7 = inlined_call_operand.hbm [shape: f32[2,1,32], index: 7, kind: input, shape index: {}]
  %s8 = inlined_call_operand.vmem [shape: f32[2,1,32], index: 8, kind: input, shape index: {}]
  %s9 = inlined_call_operand.vmem [shape: bf16[2,32,64], index: 9, kind: input, shape index: {}]
  %s10 = inlined_call_operand.vmem [shape: f32[2,1,64], index: 10, kind: input, shape index: {}]
  %s11 = inlined_call_operand.vmem [shape: bf16[2,64,32], index: 11, kind: input, shape index: {}]
  %s12 = inlined_call_operand.vmem [shape: f32[2,1,32], index: 12, kind: input, shape index: {}]
  %s13 = inlined_call_operand.hbm [shape: f32[2,1,32], index: 13, kind: input, shape index: {}]
  %s14 = inlined_call_operand.vmem [shape: f32[2,1,32], index: 14, kind: input, shape index: {}]
  %s15 = inlined_call_operand.hbm [shape: f32[16,32], index: 15, kind: output, shape index: {}]
  %s16 = sld [smem:[#allocation0]]
  $region113: #{tpu_custom_call.1} parent=0
    _
  %s18 = ssub.s32 1, %s16
  %s19 = scalar_select 0, %s18, %s16
  $region1: #{tpu_custom_call.1} parent=0
    #allocation4 [shape = 'u8[8192]{0}', space=vmem, size = 0x2000, scoped, tag = 'input window, operand 0, single buffered']
    #allocation5 [shape = 's32[2]{0}', space=sflag, size = 0x8, scoped, tag = 'scoped memory for tpu_custom_call.1']
    #allocation6 [shape = 's32[2]{0}', space=sflag, size = 0x8, scoped, tag = 'scoped memory for tpu_custom_call.1']
    #allocation7 [shape = 'u8[512]{0}', space=vmem, size = 0x400, scoped, tag = 'input window, operand 1, single buffered']
    #allocation8 [shape = 's32[1]{0}', space=sflag, size = 0x4, scoped, tag = 'scoped memory for tpu_custom_call.1']
    #allocation9 [shape = 'u8[1024]{0}', space=vmem, size = 0x400, scoped, tag = 'input window, operand 7']
    #allocation10 [shape = 'u8[1024]{0}', space=vmem, size = 0x400, scoped, tag = 'input window, operand 13']
    #allocation11 [shape = 'u8[8192]{0}', space=vmem, size = 0x2000, scoped, tag = 'output window, operand 0, single buffered']
    %20 = vsyncpa [#allocation5], 0
    %21 = vsyncpa [#allocation8], 0
    %22 = vsyncpa [#allocation6], 0
    loop: start=0, step=1, limit=4
    $region2: #{tpu_custom_call.1} parent=1 // loop_pre_header
      _
    $region3: #{tpu_custom_call.1} parent=1 // loop_header
      %s24 = sphi 0, %s28
      %p25 = scmp.ge.s32.totalorder %s24, 4
      %s32 = sphi 0, %s32
      %s34 = sphi 0, %s32
      %s35 = sphi 0, %s34
      %s49 = sphi 0, %s35
      %s53 = sphi 0, %s53
      %s55 = sphi 0, %s53
      %s56 = sphi 0, %s55
      %s70 = sphi 0, %s56
      %s74 = sphi 0, %s74
      %s76 = sphi 0, %s74
      %s77 = sphi 0, %s76
      %s91 = sphi 0, %s77
      %s97 = sphi 0, %s99
      %s100 = sphi 0, %s97
      %s101 = sphi 0, %s100
      %s117 = sphi 0, %s101
      %s123 = sphi 0, %s125
      %s126 = sphi 0, %s123
      %s127 = sphi 0, %s126
      %s143 = sphi 0, %s127
      %s149 = sphi 0, %s151
      %s152 = sphi 0, %s149
      %s153 = sphi 0, %s152
      %s169 = sphi 0, %s153
      %s175 = sphi 0, %s177
      %s178 = sphi 0, %s175
      %s179 = sphi 0, %s178
      %s195 = sphi 0, %s179
      %s201 = sphi 0, %s203
      %s204 = sphi 0, %s201
      %s205 = sphi 0, %s204
      %s221 = sphi 0, %s205
      %s227 = sphi 0, %s229
      %s230 = sphi 0, %s227
      %s231 = sphi 0, %s230
      %s247 = sphi 0, %s231
      %s253 = sphi 0, %s255
      %s256 = sphi 0, %s253
      %s257 = sphi 0, %s256
      %s273 = sphi 0, %s257
      %s279 = sphi 0, %s281
      %s282 = sphi 0, %s279
      %s283 = sphi 0, %s282
      %s299 = sphi 0, %s283
      %s305 = sphi 0, %s307
      %s308 = sphi 0, %s305
      %s309 = sphi 0, %s308
      %s325 = sphi 0, %s309
      %s331 = sphi 0, %s333
      %s334 = sphi 0, %s331
      %s335 = sphi 0, %s334
      %s351 = sphi 0, %s335
      %s357 = sphi 0, %s359
      %s360 = sphi 0, %s357
      %s361 = sphi 0, %s360
      %s377 = sphi 0, %s361
      %s383 = sphi 0, %s385
      %s386 = sphi 0, %s383
      %s387 = sphi 0, %s386
      %s403 = sphi 0, %s387
      %s407 = sphi 0, %s407
      %s409 = sphi 0, %s407
      %s410 = sphi 0, %s409
      %s424 = sphi 0, %s410
    $region4: #{tpu_custom_call.1} parent=1 // loop_header_branch
      %27 = sbr.rel (%p25) target = $region8
    $region5: #{tpu_custom_call.1} parent=1 // loop_body
      %s29 = ssub.s32 %s24, 1
      %s30 = ssub.s32 %s24, 2
      %s31 = sadd.s32 %s24, 1
      %s33 = sadd.s32 %s32, 1
      %p36 = scmp.eq.s32.totalorder %s24, 1
      %p37 = scmp.ne.s32.totalorder %s32, %s34
      %p38 = scmp.eq.s32.totalorder %s24, 0
      %p39 = por %p37, %p38
      %p40 = scmp.ne.s32.totalorder %s32, %s34
      %p41 = scmp.eq.s32.totalorder %s29, 1
      %p42 = por %p40, %p41
      %p43 = scmp.ne.s32.totalorder %s34, %s35
      %p44 = scmp.eq.s32.totalorder %s29, 0
      %p45 = por %p43, %p44
      %p46 = scmp.ne.s32.totalorder %s34, %s35
      %p47 = scmp.eq.s32.totalorder %s30, 1
      %p48 = por %p46, %p47
      %p50 = scmp.ne.s32.totalorder %s35, %s49
      %p51 = scmp.eq.s32.totalorder %s30, 0
      %p52 = por %p50, %p51
      %s54 = sadd.s32 %s53, 1
      %p57 = scmp.eq.s32.totalorder %s24, 1
      %p58 = scmp.ne.s32.totalorder %s53, %s55
      %p59 = scmp.eq.s32.totalorder %s24, 0
      %p60 = por %p58, %p59
      %p61 = scmp.ne.s32.totalorder %s53, %s55
      %p62 = scmp.eq.s32.totalorder %s29, 1
      %p63 = por %p61, %p62
      %p64 = scmp.ne.s32.totalorder %s55, %s56
      %p65 = scmp.eq.s32.totalorder %s29, 0
      %p66 = por %p64, %p65
      %p67 = scmp.ne.s32.totalorder %s55, %s56
      %p68 = scmp.eq.s32.totalorder %s30, 1
      %p69 = por %p67, %p68
      %p71 = scmp.ne.s32.totalorder %s56, %s70
      %p72 = scmp.eq.s32.totalorder %s30, 0
      %p73 = por %p71, %p72
      %s75 = sadd.s32 %s74, 1
      %p78 = scmp.eq.s32.totalorder %s24, 1
      %p79 = scmp.ne.s32.totalorder %s74, %s76
      %p80 = scmp.eq.s32.totalorder %s24, 0
      %p81 = por %p79, %p80
      %p82 = scmp.ne.s32.totalorder %s74, %s76
      %p83 = scmp.eq.s32.totalorder %s29, 1
      %p84 = por %p82, %p83
      %p85 = scmp.ne.s32.totalorder %s76, %s77
      %p86 = scmp.eq.s32.totalorder %s29, 0
      %p87 = por %p85, %p86
      %p88 = scmp.ne.s32.totalorder %s76, %s77
      %p89 = scmp.eq.s32.totalorder %s30, 1
      %p90 = por %p88, %p89
      %p92 = scmp.ne.s32.totalorder %s77, %s91
      %p93 = scmp.eq.s32.totalorder %s30, 0
      %p94 = por %p92, %p93
      %s95 = ssub.s32 %s24, %s31
      %p96 = scmp.eq.s32.totalorder %s95, 0
      %s98 = sadd.s32 %s97, 1
      %s99 = scalar_select %p96, %s97, %s98
      %p102 = pneg %p96
      %p103 = scmp.eq.s32.totalorder %s24, 1
      %p104 = por %p102, %p103
      %p105 = scmp.ne.s32.totalorder %s97, %s100
      %p106 = scmp.eq.s32.totalorder %s24, 0
      %p107 = por %p105, %p106
      %p108 = scmp.ne.s32.totalorder %s97, %s100
      %p109 = scmp.eq.s32.totalorder %s29, 1
      %p110 = por %p108, %p109
      %p111 = scmp.ne.s32.totalorder %s100, %s101
      %p112 = scmp.eq.s32.totalorder %s29, 0
      %p113 = por %p111, %p112
      %p114 = scmp.ne.s32.totalorder %s100, %s101
      %p115 = scmp.eq.s32.totalorder %s30, 1
      %p116 = por %p114, %p115
      %p118 = scmp.ne.s32.totalorder %s101, %s117
      %p119 = scmp.eq.s32.totalorder %s30, 0
      %p120 = por %p118, %p119
      %s121 = ssub.s32 %s24, %s31
      %p122 = scmp.eq.s32.totalorder %s121, 0
      %s124 = sadd.s32 %s123, 1
      %s125 = scalar_select %p122, %s123, %s124
      %p128 = pneg %p122
      %p129 = scmp.eq.s32.totalorder %s24, 1
      %p130 = por %p128, %p129
      %p131 = scmp.ne.s32.totalorder %s123, %s126
      %p132 = scmp.eq.s32.totalorder %s24, 0
      %p133 = por %p131, %p132
      %p134 = scmp.ne.s32.totalorder %s123, %s126
      %p135 = scmp.eq.s32.totalorder %s29, 1
      %p136 = por %p134, %p135
      %p137 = scmp.ne.s32.totalorder %s126, %s127
      %p138 = scmp.eq.s32.totalorder %s29, 0
      %p139 = por %p137, %p138
      %p140 = scmp.ne.s32.totalorder %s126, %s127
      %p141 = scmp.eq.s32.totalorder %s30, 1
      %p142 = por %p140, %p141
      %p144 = scmp.ne.s32.totalorder %s127, %s143
      %p145 = scmp.eq.s32.totalorder %s30, 0
      %p146 = por %p144, %p145
      %s147 = ssub.s32 %s24, %s31
      %p148 = scmp.eq.s32.totalorder %s147, 0
      %s150 = sadd.s32 %s149, 1
      %s151 = scalar_select %p148, %s149, %s150
      %p154 = pneg %p148
      %p155 = scmp.eq.s32.totalorder %s24, 1
      %p156 = por %p154, %p155
      %p157 = scmp.ne.s32.totalorder %s149, %s152
      %p158 = scmp.eq.s32.totalorder %s24, 0
      %p159 = por %p157, %p158
      %p160 = scmp.ne.s32.totalorder %s149, %s152
      %p161 = scmp.eq.s32.totalorder %s29, 1
      %p162 = por %p160, %p161
      %p163 = scmp.ne.s32.totalorder %s152, %s153
      %p164 = scmp.eq.s32.totalorder %s29, 0
      %p165 = por %p163, %p164
      %p166 = scmp.ne.s32.totalorder %s152, %s153
      %p167 = scmp.eq.s32.totalorder %s30, 1
      %p168 = por %p166, %p167
      %p170 = scmp.ne.s32.totalorder %s153, %s169
      %p171 = scmp.eq.s32.totalorder %s30, 0
      %p172 = por %p170, %p171
      %s173 = ssub.s32 %s24, %s31
      %p174 = scmp.eq.s32.totalorder %s173, 0
      %s176 = sadd.s32 %s175, 1
      %s177 = scalar_select %p174, %s175, %s176
      %p180 = pneg %p174
      %p181 = scmp.eq.s32.totalorder %s24, 1
      %p182 = por %p180, %p181
      %p183 = scmp.ne.s32.totalorder %s175, %s178
      %p184 = scmp.eq.s32.totalorder %s24, 0
      %p185 = por %p183, %p184
      %p186 = scmp.ne.s32.totalorder %s175, %s178
      %p187 = scmp.eq.s32.totalorder %s29, 1
      %p188 = por %p186, %p187
      %p189 = scmp.ne.s32.totalorder %s178, %s179
      %p190 = scmp.eq.s32.totalorder %s29, 0
      %p191 = por %p189, %p190
      %p192 = scmp.ne.s32.totalorder %s178, %s179
      %p193 = scmp.eq.s32.totalorder %s30, 1
      %p194 = por %p192, %p193
      %p196 = scmp.ne.s32.totalorder %s179, %s195
      %p197 = scmp.eq.s32.totalorder %s30, 0
      %p198 = por %p196, %p197
      %s199 = ssub.s32 %s24, %s31
      %p200 = scmp.eq.s32.totalorder %s199, 0
      %s202 = sadd.s32 %s201, 1
      %s203 = scalar_select %p200, %s201, %s202
      %p206 = pneg %p200
      %p207 = scmp.eq.s32.totalorder %s24, 1
      %p208 = por %p206, %p207
      %p209 = scmp.ne.s32.totalorder %s201, %s204
      %p210 = scmp.eq.s32.totalorder %s24, 0
      %p211 = por %p209, %p210
      %p212 = scmp.ne.s32.totalorder %s201, %s204
      %p213 = scmp.eq.s32.totalorder %s29, 1
      %p214 = por %p212, %p213
      %p215 = scmp.ne.s32.totalorder %s204, %s205
      %p216 = scmp.eq.s32.totalorder %s29, 0
      %p217 = por %p215, %p216
      %p218 = scmp.ne.s32.totalorder %s204, %s205
      %p219 = scmp.eq.s32.totalorder %s30, 1
      %p220 = por %p218, %p219
      %p222 = scmp.ne.s32.totalorder %s205, %s221
      %p223 = scmp.eq.s32.totalorder %s30, 0
      %p224 = por %p222, %p223
      %s225 = ssub.s32 %s24, %s31
      %p226 = scmp.eq.s32.totalorder %s225, 0
      %s228 = sadd.s32 %s227, 1
      %s229 = scalar_select %p226, %s227, %s228
      %p232 = pneg %p226
      %p233 = scmp.eq.s32.totalorder %s24, 1
      %p234 = por %p232, %p233
      %p235 = scmp.ne.s32.totalorder %s227, %s230
      %p236 = scmp.eq.s32.totalorder %s24, 0
      %p237 = por %p235, %p236
      %p238 = scmp.ne.s32.totalorder %s227, %s230
      %p239 = scmp.eq.s32.totalorder %s29, 1
      %p240 = por %p238, %p239
      %p241 = scmp.ne.s32.totalorder %s230, %s231
      %p242 = scmp.eq.s32.totalorder %s29, 0
      %p243 = por %p241, %p242
      %p244 = scmp.ne.s32.totalorder %s230, %s231
      %p245 = scmp.eq.s32.totalorder %s30, 1
      %p246 = por %p244, %p245
      %p248 = scmp.ne.s32.totalorder %s231, %s247
      %p249 = scmp.eq.s32.totalorder %s30, 0
      %p250 = por %p248, %p249
      %s251 = ssub.s32 %s24, %s31
      %p252 = scmp.eq.s32.totalorder %s251, 0
      %s254 = sadd.s32 %s253, 1
      %s255 = scalar_select %p252, %s253, %s254
      %p258 = pneg %p252
      %p259 = scmp.eq.s32.totalorder %s24, 1
      %p260 = por %p258, %p259
      %p261 = scmp.ne.s32.totalorder %s253, %s256
      %p262 = scmp.eq.s32.totalorder %s24, 0
      %p263 = por %p261, %p262
      %p264 = scmp.ne.s32.totalorder %s253, %s256
      %p265 = scmp.eq.s32.totalorder %s29, 1
      %p266 = por %p264, %p265
      %p267 = scmp.ne.s32.totalorder %s256, %s257
      %p268 = scmp.eq.s32.totalorder %s29, 0
      %p269 = por %p267, %p268
      %p270 = scmp.ne.s32.totalorder %s256, %s257
      %p271 = scmp.eq.s32.totalorder %s30, 1
      %p272 = por %p270, %p271
      %p274 = scmp.ne.s32.totalorder %s257, %s273
      %p275 = scmp.eq.s32.totalorder %s30, 0
      %p276 = por %p274, %p275
      %s277 = ssub.s32 %s24, %s31
      %p278 = scmp.eq.s32.totalorder %s277, 0
      %s280 = sadd.s32 %s279, 1
      %s281 = scalar_select %p278, %s279, %s280
      %p284 = pneg %p278
      %p285 = scmp.eq.s32.totalorder %s24, 1
      %p286 = por %p284, %p285
      %p287 = scmp.ne.s32.totalorder %s279, %s282
      %p288 = scmp.eq.s32.totalorder %s24, 0
      %p289 = por %p287, %p288
      %p290 = scmp.ne.s32.totalorder %s279, %s282
      %p291 = scmp.eq.s32.totalorder %s29, 1
      %p292 = por %p290, %p291
      %p293 = scmp.ne.s32.totalorder %s282, %s283
      %p294 = scmp.eq.s32.totalorder %s29, 0
      %p295 = por %p293, %p294
      %p296 = scmp.ne.s32.totalorder %s282, %s283
      %p297 = scmp.eq.s32.totalorder %s30, 1
      %p298 = por %p296, %p297
      %p300 = scmp.ne.s32.totalorder %s283, %s299
      %p301 = scmp.eq.s32.totalorder %s30, 0
      %p302 = por %p300, %p301
      %s303 = ssub.s32 %s24, %s31
      %p304 = scmp.eq.s32.totalorder %s303, 0
      %s306 = sadd.s32 %s305, 1
      %s307 = scalar_select %p304, %s305, %s306
      %p310 = pneg %p304
      %p311 = scmp.eq.s32.totalorder %s24, 1
      %p312 = por %p310, %p311
      %p313 = scmp.ne.s32.totalorder %s305, %s308
      %p314 = scmp.eq.s32.totalorder %s24, 0
      %p315 = por %p313, %p314
      %p316 = scmp.ne.s32.totalorder %s305, %s308
      %p317 = scmp.eq.s32.totalorder %s29, 1
      %p318 = por %p316, %p317
      %p319 = scmp.ne.s32.totalorder %s308, %s309
      %p320 = scmp.eq.s32.totalorder %s29, 0
      %p321 = por %p319, %p320
      %p322 = scmp.ne.s32.totalorder %s308, %s309
      %p323 = scmp.eq.s32.totalorder %s30, 1
      %p324 = por %p322, %p323
      %p326 = scmp.ne.s32.totalorder %s309, %s325
      %p327 = scmp.eq.s32.totalorder %s30, 0
      %p328 = por %p326, %p327
      %s329 = ssub.s32 %s24, %s31
      %p330 = scmp.eq.s32.totalorder %s329, 0
      %s332 = sadd.s32 %s331, 1
      %s333 = scalar_select %p330, %s331, %s332
      %p336 = pneg %p330
      %p337 = scmp.eq.s32.totalorder %s24, 1
      %p338 = por %p336, %p337
      %p339 = scmp.ne.s32.totalorder %s331, %s334
      %p340 = scmp.eq.s32.totalorder %s24, 0
      %p341 = por %p339, %p340
      %p342 = scmp.ne.s32.totalorder %s331, %s334
      %p343 = scmp.eq.s32.totalorder %s29, 1
      %p344 = por %p342, %p343
      %p345 = scmp.ne.s32.totalorder %s334, %s335
      %p346 = scmp.eq.s32.totalorder %s29, 0
      %p347 = por %p345, %p346
      %p348 = scmp.ne.s32.totalorder %s334, %s335
      %p349 = scmp.eq.s32.totalorder %s30, 1
      %p350 = por %p348, %p349
      %p352 = scmp.ne.s32.totalorder %s335, %s351
      %p353 = scmp.eq.s32.totalorder %s30, 0
      %p354 = por %p352, %p353
      %s355 = ssub.s32 %s24, %s31
      %p356 = scmp.eq.s32.totalorder %s355, 0
      %s358 = sadd.s32 %s357, 1
      %s359 = scalar_select %p356, %s357, %s358
      %p362 = pneg %p356
      %p363 = scmp.eq.s32.totalorder %s24, 1
      %p364 = por %p362, %p363
      %p365 = scmp.ne.s32.totalorder %s357, %s360
      %p366 = scmp.eq.s32.totalorder %s24, 0
      %p367 = por %p365, %p366
      %p368 = scmp.ne.s32.totalorder %s357, %s360
      %p369 = scmp.eq.s32.totalorder %s29, 1
      %p370 = por %p368, %p369
      %p371 = scmp.ne.s32.totalorder %s360, %s361
      %p372 = scmp.eq.s32.totalorder %s29, 0
      %p373 = por %p371, %p372
      %p374 = scmp.ne.s32.totalorder %s360, %s361
      %p375 = scmp.eq.s32.totalorder %s30, 1
      %p376 = por %p374, %p375
      %p378 = scmp.ne.s32.totalorder %s361, %s377
      %p379 = scmp.eq.s32.totalorder %s30, 0
      %p380 = por %p378, %p379
      %s381 = ssub.s32 %s24, %s31
      %p382 = scmp.eq.s32.totalorder %s381, 0
      %s384 = sadd.s32 %s383, 1
      %s385 = scalar_select %p382, %s383, %s384
      %p388 = pneg %p382
      %p389 = scmp.eq.s32.totalorder %s24, 1
      %p390 = por %p388, %p389
      %p391 = scmp.ne.s32.totalorder %s383, %s386
      %p392 = scmp.eq.s32.totalorder %s24, 0
      %p393 = por %p391, %p392
      %p394 = scmp.ne.s32.totalorder %s383, %s386
      %p395 = scmp.eq.s32.totalorder %s29, 1
      %p396 = por %p394, %p395
      %p397 = scmp.ne.s32.totalorder %s386, %s387
      %p398 = scmp.eq.s32.totalorder %s29, 0
      %p399 = por %p397, %p398
      %p400 = scmp.ne.s32.totalorder %s386, %s387
      %p401 = scmp.eq.s32.totalorder %s30, 1
      %p402 = por %p400, %p401
      %p404 = scmp.ne.s32.totalorder %s387, %s403
      %p405 = scmp.eq.s32.totalorder %s30, 0
      %p406 = por %p404, %p405
      %s408 = sadd.s32 %s407, 1
      %p411 = scmp.eq.s32.totalorder %s24, 1
      %p412 = scmp.ne.s32.totalorder %s407, %s409
      %p413 = scmp.eq.s32.totalorder %s24, 0
      %p414 = por %p412, %p413
      %p415 = scmp.ne.s32.totalorder %s407, %s409
      %p416 = scmp.eq.s32.totalorder %s29, 1
      %p417 = por %p415, %p416
      %p418 = scmp.ne.s32.totalorder %s409, %s410
      %p419 = scmp.eq.s32.totalorder %s29, 0
      %p420 = por %p418, %p419
      %p421 = scmp.ne.s32.totalorder %s409, %s410
      %p422 = scmp.eq.s32.totalorder %s30, 1
      %p423 = por %p421, %p422
      %p425 = scmp.ne.s32.totalorder %s410, %s424
      %p426 = scmp.eq.s32.totalorder %s30, 0
      %p427 = por %p425, %p426
      %p428 = scmp.le.s32.totalorder 1, %s24
      %p429 = scmp.lt.s32.totalorder %s24, 3
      %p430 = pnand %p428, %p429
      %p431 = pneg %p430
      // Predicated region
      $region9: #{tpu_custom_call.1} parent=5 // pred_check
        _
      $region10: #{tpu_custom_call.1} parent=5 // pred_check_branch
        %433 = sbr.rel (%p430) target = $region12
      $region11: #{tpu_custom_call.1} parent=5 // pred_region
        %s434 = ssub.s32 %s24, 1
        // Predicated region
        $region13: #{tpu_custom_call.1} parent=11 // pred_check
          %p435 = pneg %p45
        $region14: #{tpu_custom_call.1} parent=11 // pred_check_branch
          %437 = sbr.rel (%p435) target = $region16
        $region15: #{tpu_custom_call.1} parent=11 // pred_region
          %439 = vsyncadd [#allocation5], 0
          %s440 = sshll.u32 %s0, 4
          %s441 = int_to_ptr.hbm [resolvable:$true] %s440
          %s442 = sshll.u32 [#allocation4], 4
          %s443 = int_to_ptr.vmem [resolvable:$true] %s442
          %448 = dma.hbm_to_vmem [thread:$0]  %s441, 256, %s443, [#allocation5], 128, 128, 8
        $region16: #{tpu_custom_call.1} parent=11 // pred_fallthru
          _
        // Predicated region
        $region17: #{tpu_custom_call.1} parent=11 // pred_check
          %p449 = pneg %p66
        $region18: #{tpu_custom_call.1} parent=11 // pred_check_branch
          %451 = sbr.rel (%p449) target = $region20
        $region19: #{tpu_custom_call.1} parent=11 // pred_region
          %453 = vsyncadd [#allocation8], 0
          %s455 = sshll.u32 %s1, 4
          %s456 = int_to_ptr.hbm [resolvable:$true] %s455
          %s457 = sshll.u32 [#allocation7], 4
          %s458 = int_to_ptr.vmem [resolvable:$true] %s457
          %460 = dma.hbm_to_vmem [thread:$0]  %s456, 16, %s458, [#allocation8]
        $region20: #{tpu_custom_call.1} parent=11 // pred_fallthru
          _
        // Predicated region
        $region21: #{tpu_custom_call.1} parent=11 // pred_check
          %p461 = pneg %p87
        $region22: #{tpu_custom_call.1} parent=11 // pred_check_branch
          %463 = sbr.rel (%p461) target = $region24
        $region23: #{tpu_custom_call.1} parent=11 // pred_region
          _
        $region24: #{tpu_custom_call.1} parent=11 // pred_fallthru
          _
      $region12: #{tpu_custom_call.1} parent=5 // pred_fallthru
        _
      %p464 = scmp.lt.s32.totalorder %s24, 2
      // Predicated region
      $region25: #{tpu_custom_call.1} parent=5 // pred_check
        %p465 = pneg %p464
      $region26: #{tpu_custom_call.1} parent=5 // pred_check_branch
        %467 = sbr.rel (%p465) target = $region28
      $region27: #{tpu_custom_call.1} parent=5 // pred_region
        // Predicated region
        $region29: #{tpu_custom_call.1} parent=27 // pred_check
          %p468 = pneg %p107
        $region30: #{tpu_custom_call.1} parent=27 // pred_check_branch
          %470 = sbr.rel (%p468) target = $region32
        $region31: #{tpu_custom_call.1} parent=27 // pred_region
          %p471 = scmp.lt.s32.totalorder %s24, 1
          %s472 = scalar_select %p471, %s24, 1
          %s473 = smul.addr %s472, 4
          %s474 = smul.addr %s473, 4
          %s475 = scalar_lea.vmem %s3, %s474
        $region32: #{tpu_custom_call.1} parent=27 // pred_fallthru
          _
        // Predicated region
        $region33: #{tpu_custom_call.1} parent=27 // pred_check
          %p476 = pneg %p133
        $region34: #{tpu_custom_call.1} parent=27 // pred_check_branch
          %478 = sbr.rel (%p476) target = $region36
        $region35: #{tpu_custom_call.1} parent=27 // pred_region
          %p479 = scmp.lt.s32.totalorder %s24, 1
          %s480 = scalar_select %p479, %s24, 1
          %s481 = scalar_lea.vmem %s4, %s480
        $region36: #{tpu_custom_call.1} parent=27 // pred_fallthru
          _
        // Predicated region
        $region37: #{tpu_custom_call.1} parent=27 // pred_check
          %p482 = pneg %p159
        $region38: #{tpu_custom_call.1} parent=27 // pred_check_branch
          %484 = sbr.rel (%p482) target = $region40
        $region39: #{tpu_custom_call.1} parent=27 // pred_region
          %p485 = scmp.lt.s32.totalorder %s24, 1
          %s486 = scalar_select %p485, %s24, 1
          %s487 = smul.addr %s486, 4
          %s488 = smul.addr %s487, 4
          %s489 = scalar_lea.vmem %s5, %s488
        $region40: #{tpu_custom_call.1} parent=27 // pred_fallthru
          _
        // Predicated region
        $region41: #{tpu_custom_call.1} parent=27 // pred_check
          %p490 = pneg %p185
        $region42: #{tpu_custom_call.1} parent=27 // pred_check_branch
          %492 = sbr.rel (%p490) target = $region44
        $region43: #{tpu_custom_call.1} parent=27 // pred_region
          %p493 = scmp.lt.s32.totalorder %s24, 1
          %s494 = scalar_select %p493, %s24, 1
          %s495 = scalar_lea.vmem %s6, %s494
        $region44: #{tpu_custom_call.1} parent=27 // pred_fallthru
          _
        // Predicated region
        $region45: #{tpu_custom_call.1} parent=27 // pred_check
          %p496 = pneg %p211
        $region46: #{tpu_custom_call.1} parent=27 // pred_check_branch
          %498 = sbr.rel (%p496) target = $region48
        $region47: #{tpu_custom_call.1} parent=27 // pred_region
          %s499 = sand.u32 %s24, 1
          %s500 = scalar_lea.sflag [#allocation5], %s499
          %s501 = sand.u32 %s201, 1
          %s502 = scalar_lea.vmem [#allocation9], %s501
          %504 = vsyncadd %s500, 0
          %s505 = scalar_lea.hbm %s7, %s24
          %s507 = sshll.u32 %s505, 4
          %s508 = int_to_ptr.hbm [resolvable:$true] %s507
          %s509 = sshll.u32 %s502, 4
          %s510 = int_to_ptr.vmem [resolvable:$true] %s509
          %512 = dma.hbm_to_vmem [thread:$0]  %s508, 16, %s510, %s500
        $region48: #{tpu_custom_call.1} parent=27 // pred_fallthru
          _
        // Predicated region
        $region49: #{tpu_custom_call.1} parent=27 // pred_check
          %p513 = pneg %p237
        $region50: #{tpu_custom_call.1} parent=27 // pred_check_branch
          %515 = sbr.rel (%p513) target = $region52
        $region51: #{tpu_custom_call.1} parent=27 // pred_region
          %p516 = scmp.lt.s32.totalorder %s24, 1
          %s517 = scalar_select %p516, %s24, 1
          %s518 = scalar_lea.vmem %s8, %s517
        $region52: #{tpu_custom_call.1} parent=27 // pred_fallthru
          _
        // Predicated region
        $region53: #{tpu_custom_call.1} parent=27 // pred_check
          %p519 = pneg %p263
        $region54: #{tpu_custom_call.1} parent=27 // pred_check_branch
          %521 = sbr.rel (%p519) target = $region56
        $region55: #{tpu_custom_call.1} parent=27 // pred_region
          %p522 = scmp.lt.s32.totalorder %s24, 1
          %s523 = scalar_select %p522, %s24, 1
          %s524 = smul.addr %s523, 4
          %s525 = smul.addr %s524, 4
          %s526 = scalar_lea.vmem %s9, %s525
        $region56: #{tpu_custom_call.1} parent=27 // pred_fallthru
          _
        // Predicated region
        $region57: #{tpu_custom_call.1} parent=27 // pred_check
          %p527 = pneg %p289
        $region58: #{tpu_custom_call.1} parent=27 // pred_check_branch
          %529 = sbr.rel (%p527) target = $region60
        $region59: #{tpu_custom_call.1} parent=27 // pred_region
          %p530 = scmp.lt.s32.totalorder %s24, 1
          %s531 = scalar_select %p530, %s24, 1
          %s532 = scalar_lea.vmem %s10, %s531
        $region60: #{tpu_custom_call.1} parent=27 // pred_fallthru
          _
        // Predicated region
        $region61: #{tpu_custom_call.1} parent=27 // pred_check
          %p533 = pneg %p315
        $region62: #{tpu_custom_call.1} parent=27 // pred_check_branch
          %535 = sbr.rel (%p533) target = $region64
        $region63: #{tpu_custom_call.1} parent=27 // pred_region
          %p536 = scmp.lt.s32.totalorder %s24, 1
          %s537 = scalar_select %p536, %s24, 1
          %s538 = smul.addr %s537, 8
          %s539 = smul.addr %s538, 4
          %s540 = scalar_lea.vmem %s11, %s539
        $region64: #{tpu_custom_call.1} parent=27 // pred_fallthru
          _
        // Predicated region
        $region65: #{tpu_custom_call.1} parent=27 // pred_check
          %p541 = pneg %p341
        $region66: #{tpu_custom_call.1} parent=27 // pred_check_branch
          %543 = sbr.rel (%p541) target = $region68
        $region67: #{tpu_custom_call.1} parent=27 // pred_region
          %p544 = scmp.lt.s32.totalorder %s24, 1
          %s545 = scalar_select %p544, %s24, 1
          %s546 = scalar_lea.vmem %s12, %s545
        $region68: #{tpu_custom_call.1} parent=27 // pred_fallthru
          _
        // Predicated region
        $region69: #{tpu_custom_call.1} parent=27 // pred_check
          %p547 = pneg %p367
        $region70: #{tpu_custom_call.1} parent=27 // pred_check_branch
          %549 = sbr.rel (%p547) target = $region72
        $region71: #{tpu_custom_call.1} parent=27 // pred_region
          %s550 = sand.u32 %s24, 1
          %s551 = scalar_lea.sflag [#allocation5], %s550
          %s552 = sand.u32 %s357, 1
          %s553 = scalar_lea.vmem [#allocation10], %s552
          %555 = vsyncadd %s551, 0
          %s556 = scalar_lea.hbm %s13, %s24
          %s558 = sshll.u32 %s556, 4
          %s559 = int_to_ptr.hbm [resolvable:$true] %s558
          %s560 = sshll.u32 %s553, 4
          %s561 = int_to_ptr.vmem [resolvable:$true] %s560
          %563 = dma.hbm_to_vmem [thread:$0]  %s559, 16, %s561, %s551
        $region72: #{tpu_custom_call.1} parent=27 // pred_fallthru
          _
        // Predicated region
        $region73: #{tpu_custom_call.1} parent=27 // pred_check
          %p564 = pneg %p393
        $region74: #{tpu_custom_call.1} parent=27 // pred_check_branch
          %566 = sbr.rel (%p564) target = $region76
        $region75: #{tpu_custom_call.1} parent=27 // pred_region
          %p567 = scmp.lt.s32.totalorder %s24, 1
          %s568 = scalar_select %p567, %s24, 1
          %s569 = scalar_lea.vmem %s14, %s568
        $region76: #{tpu_custom_call.1} parent=27 // pred_fallthru
          _
      $region28: #{tpu_custom_call.1} parent=5 // pred_fallthru
        _
      %p570 = scmp.le.s32.totalorder 1, %s24
      %p571 = scmp.lt.s32.totalorder %s24, 3
      %p572 = pnand %p570, %p571
      %p573 = pneg %p572
      // Predicated region
      $region77: #{tpu_custom_call.1} parent=5 // pred_check
        _
      $region78: #{tpu_custom_call.1} parent=5 // pred_check_branch
        %575 = sbr.rel (%p572) target = $region80
      $region79: #{tpu_custom_call.1} parent=5 // pred_region
        %s576 = ssub.s32 %s24, 1
        // Predicated region
        $region81: #{tpu_custom_call.1} parent=79 // pred_check
          %p577 = pneg %p45
        $region82: #{tpu_custom_call.1} parent=79 // pred_check_branch
          %579 = sbr.rel (%p577) target = $region84
        $region83: #{tpu_custom_call.1} parent=79 // pred_region
          %581 = dma.done [#allocation5], 256
        $region84: #{tpu_custom_call.1} parent=79 // pred_fallthru
          _
        // Predicated region
        $region85: #{tpu_custom_call.1} parent=79 // pred_check
          %p582 = pneg %p66
        $region86: #{tpu_custom_call.1} parent=79 // pred_check_branch
          %584 = sbr.rel (%p582) target = $region88
        $region87: #{tpu_custom_call.1} parent=79 // pred_region
          %586 = dma.done [#allocation8], 16
        $region88: #{tpu_custom_call.1} parent=79 // pred_fallthru
          _
        %s587 = sand.u32 %s29, 1
        %s588 = scalar_lea.sflag [#allocation5], %s587
        %s589 = sand.u32 %s204, 1
        %s590 = scalar_lea.vmem [#allocation9], %s589
        // Predicated region
        $region89: #{tpu_custom_call.1} parent=79 // pred_check
          %p591 = pneg %p217
        $region90: #{tpu_custom_call.1} parent=79 // pred_check_branch
          %593 = sbr.rel (%p591) target = $region92
        $region91: #{tpu_custom_call.1} parent=79 // pred_region
          %595 = dma.done %s588, 16
        $region92: #{tpu_custom_call.1} parent=79 // pred_fallthru
          _
        %s596 = sand.u32 %s29, 1
        %s597 = scalar_lea.sflag [#allocation5], %s596
        %s598 = sand.u32 %s360, 1
        %s599 = scalar_lea.vmem [#allocation10], %s598
        // Predicated region
        $region93: #{tpu_custom_call.1} parent=79 // pred_check
          %p600 = pneg %p373
        $region94: #{tpu_custom_call.1} parent=79 // pred_check_branch
          %602 = sbr.rel (%p600) target = $region96
        $region95: #{tpu_custom_call.1} parent=79 // pred_region
          %604 = dma.done %s597, 16
        $region96: #{tpu_custom_call.1} parent=79 // pred_fallthru
          _
        %p605 = pneg %p45
        %p606 = pneg %p42
        %p607 = pneg %p66
        %p608 = pneg %p63
        %p609 = pneg %p87
        %p610 = pneg %p84
        %p611 = scmp.lt.s32.totalorder %s29, 1
        %s612 = scalar_select %p611, %s29, 1
        %s613 = smul.addr %s612, 4
        %s614 = smul.addr %s613, 4
        %s615 = scalar_lea.vmem %s3, %s614
        %p616 = pneg %p113
        %p617 = pneg %p110
        %p618 = scmp.lt.s32.totalorder %s29, 1
        %s619 = scalar_select %p618, %s29, 1
        %s620 = scalar_lea.vmem %s4, %s619
        %p621 = pneg %p139
        %p622 = pneg %p136
        %p623 = scmp.lt.s32.totalorder %s29, 1
        %s624 = scalar_select %p623, %s29, 1
        %s625 = smul.addr %s624, 4
        %s626 = smul.addr %s625, 4
        %s627 = scalar_lea.vmem %s5, %s626
        %p628 = pneg %p165
        %p629 = pneg %p162
        %p630 = scmp.lt.s32.totalorder %s29, 1
        %s631 = scalar_select %p630, %s29, 1
        %s632 = scalar_lea.vmem %s6, %s631
        %p633 = pneg %p191
        %p634 = pneg %p188
        %s635 = sand.u32 %s29, 1
        %s636 = scalar_lea.sflag [#allocation5], %s635
        %s637 = sand.u32 %s204, 1
        %s638 = scalar_lea.vmem [#allocation9], %s637
        %p639 = pneg %p217
        %p640 = pneg %p214
        %p641 = scmp.lt.s32.totalorder %s29, 1
        %s642 = scalar_select %p641, %s29, 1
        %s643 = scalar_lea.vmem %s8, %s642
        %p644 = pneg %p243
        %p645 = pneg %p240
        %p646 = scmp.lt.s32.totalorder %s29, 1
        %s647 = scalar_select %p646, %s29, 1
        %s648 = smul.addr %s647, 4
        %s649 = smul.addr %s648, 4
        %s650 = scalar_lea.vmem %s9, %s649
        %p651 = pneg %p269
        %p652 = pneg %p266
        %p653 = scmp.lt.s32.totalorder %s29, 1
        %s654 = scalar_select %p653, %s29, 1
        %s655 = scalar_lea.vmem %s10, %s654
        %p656 = pneg %p295
        %p657 = pneg %p292
        %p658 = scmp.lt.s32.totalorder %s29, 1
        %s659 = scalar_select %p658, %s29, 1
        %s660 = smul.addr %s659, 8
        %s661 = smul.addr %s660, 4
        %s662 = scalar_lea.vmem %s11, %s661
        %p663 = pneg %p321
        %p664 = pneg %p318
        %p665 = scmp.lt.s32.totalorder %s29, 1
        %s666 = scalar_select %p665, %s29, 1
        %s667 = scalar_lea.vmem %s12, %s666
        %p668 = pneg %p347
        %p669 = pneg %p344
        %s670 = sand.u32 %s29, 1
        %s671 = scalar_lea.sflag [#allocation5], %s670
        %s672 = sand.u32 %s360, 1
        %s673 = scalar_lea.vmem [#allocation10], %s672
        %p674 = pneg %p373
        %p675 = pneg %p370
        %p676 = scmp.lt.s32.totalorder %s29, 1
        %s677 = scalar_select %p676, %s29, 1
        %s678 = scalar_lea.vmem %s14, %s677
        %p679 = pneg %p399
        %p680 = pneg %p396
        %p681 = pneg %p420
        %p682 = pneg %p417
        %p683 = scmp.lt.s32.totalorder %s29, 1
        %s684 = scalar_select %p683, %s29, 1
        %s685 = smul.addr %s684, 4
        %s686 = smul.addr %s685, 4
        %s687 = scalar_lea.vmem %s3, %s686
        %p688 = scmp.lt.s32.totalorder %s29, 1
        %s689 = scalar_select %p688, %s29, 1
        %s690 = scalar_lea.vmem %s4, %s689
        %p691 = scmp.lt.s32.totalorder %s29, 1
        %s692 = scalar_select %p691, %s29, 1
        %s693 = smul.addr %s692, 4
        %s694 = smul.addr %s693, 4
        %s695 = scalar_lea.vmem %s5, %s694
        %p696 = scmp.lt.s32.totalorder %s29, 1
        %s697 = scalar_select %p696, %s29, 1
        %s698 = scalar_lea.vmem %s6, %s697
        %p699 = scmp.lt.s32.totalorder %s29, 1
        %s700 = scalar_select %p699, %s29, 1
        %s701 = scalar_lea.vmem %s8, %s700
        %p702 = scmp.lt.s32.totalorder %s29, 1
        %s703 = scalar_select %p702, %s29, 1
        %s704 = smul.addr %s703, 4
        %s705 = smul.addr %s704, 4
        %s706 = scalar_lea.vmem %s9, %s705
        %p707 = scmp.lt.s32.totalorder %s29, 1
        %s708 = scalar_select %p707, %s29, 1
        %s709 = scalar_lea.vmem %s10, %s708
        %p710 = scmp.lt.s32.totalorder %s29, 1
        %s711 = scalar_select %p710, %s29, 1
        %s712 = smul.addr %s711, 8
        %s713 = smul.addr %s712, 4
        %s714 = scalar_lea.vmem %s11, %s713
        %p715 = scmp.lt.s32.totalorder %s29, 1
        %s716 = scalar_select %p715, %s29, 1
        %s717 = scalar_lea.vmem %s12, %s716
        %p718 = scmp.lt.s32.totalorder %s29, 1
        %s719 = scalar_select %p718, %s29, 1
        %s720 = scalar_lea.vmem %s14, %s719
        %p722 = scmp.eq.s32.totalorder %s29, 0
        // Predicated region
        $region97: #{tpu_custom_call.1} parent=79 // pred_check
          %p723 = pneg %p722
        $region98: #{tpu_custom_call.1} parent=79 // pred_check_branch
          %725 = sbr.rel (%p723) target = $region100
        $region99: #{tpu_custom_call.1} parent=79 // pred_region
          %v726 = vld [vmem:[#allocation4] sm:$0xff]
          %v727 = vld [vmem:[#allocation4 + $0x8] sm:$0xff]
          %v728 = vld [vmem:[#allocation7] sm:$0x1]
          %v729 = vld [vmem:[%s2] sm:$0x1]
          %vm730 = vcmask 261120
          %v731 = vsel %vm730, %v726, 0.0
          %732 = vadd.xlane.f32.xlu0 %v731
          %v733 = vpop.xlane.xlu0 %732
          %v734 = vsel %vm730, %v727, 0.0
          %735 = vadd.xlane.f32.xlu0 %v734
          %v736 = vpop.xlane.xlu0 %735
          %v737 = vrcp.pop 32.0
          %v738 = vmul.f32 32.0, %v737
          %v739 = vsub.f32 1.0, %v738
          %v740 = vmul.f32 %v737, %v739
          %v741 = vadd.f32 %v737, %v740
          %vm742 = vweird.f32 %v737
          %v743 = vsel %vm742, %v737, %v741
          %v744 = vmul.f32 %v733, %v743
          %v745 = vmul.f32 %v736, %v743
          %v746 = vsub.f32 %v726, %v744
          %v747 = vsub.f32 %v727, %v745
          %v748 = vmul.f32 %v746, %v746
          %v749 = vmul.f32 %v747, %v747
          %v750 = vsel %vm730, %v748, 0.0
          %751 = vadd.xlane.f32.xlu0 %v750
          %v752 = vpop.xlane.xlu0 %751
          %v753 = vsel %vm730, %v749, 0.0
          %754 = vadd.xlane.f32.xlu0 %v753
          %v755 = vpop.xlane.xlu0 %754
          %v756 = vmul.f32 %v752, %v743
          %v757 = vmul.f32 %v755, %v743
          %v758 = vadd.f32 %v756, 1e-12
          %v759 = vadd.f32 %v757, 1e-12
          %v760 = vrsqrt.pop %v758
          %v761 = vmul.f32 %v760, %v758
          %v762 = vmul.f32 %v761, %v760
          %v763 = vmul.f32 0.5, %v762
          %v764 = vsub.f32 1.5, %v763
          %v765 = vmul.f32 %v760, %v764
          %vm766 = vweird.f32 %v758
          %vm767 = vweird.f32 %v760
          %vm768 = vmor %vm766, %vm767
          %v769 = vsel %vm768, %v760, %v765
          %v770 = vrsqrt.pop %v759
          %v771 = vmul.f32 %v770, %v759
          %v772 = vmul.f32 %v771, %v770
          %v773 = vmul.f32 0.5, %v772
          %v774 = vsub.f32 1.5, %v773
          %v775 = vmul.f32 %v770, %v774
          %vm776 = vweird.f32 %v759
          %vm777 = vweird.f32 %v770
          %vm778 = vmor %vm776, %vm777
          %v779 = vsel %vm778, %v770, %v775
          %v780 = vmul.f32 %v746, %v769
          %v781 = vmul.f32 %v747, %v779
          %v783 = vperm.slane %v728, 0
          %v785 = vmul.f32 %v780, %v783
          %v786 = vmul.f32 %v781, %v783
          %v788 = vperm.slane %v729, 0
          %v790 = vadd.f32 %v785, %v788
          %v791 = vadd.f32 %v786, %v788
          %792 = vst.msk [vmem:[#allocation3] sm:$0xff] %vm730, %v790
          %793 = vst.msk [vmem:[#allocation3 + $0x8] sm:$0xff] %vm730, %v791
        $region100: #{tpu_custom_call.1} parent=79 // pred_fallthru
          _
        %v794 = vld [vmem:[#allocation3] sm:$0xff]
        %v795 = vld [vmem:[#allocation3 + $0x8] sm:$0xff]
        %v796 = vld [vmem:[%s687] sm:$0xf]
        %v797 = vld [vmem:[%s687 + $0x4] sm:$0xf]
        %v798 = vld [vmem:[%s687 + $0x8] sm:$0xf]
        %v799 = vld [vmem:[%s687 + $0xc] sm:$0xf]
        %v800 = vld [vmem:[%s690] sm:$0x1]
        %v801 = vpack.c.bf16 %v795, %v794
        %v803 = vperm.slane %v800, 0
        %v809 = vunpack.c.l.b16 %v796
        %v810 = vunpack.c.l.b16 %v797
        %v811 = vunpack.c.l.b16 %v798
        %v812 = vunpack.c.l.b16 %v799
        %v813 = vpack.c.b16 %v810, %v809
        %v814 = vpack.c.b16 %v812, %v811
        %vm817 = vcmask 261120
        %v819 = vsel %vm817, %v801, 0
        %821 = vmatpush.bf16.msra.mxu0 0
        %822 = vmatpush.bf16.msra.mxu0 0
        %823 = vmatpush.bf16.msra.mxu0 0
        %824 = vmatpush.bf16.msra.mxu0 0
        %825 = vmatpush.bf16.msra.mxu0 0
        %826 = vmatpush.bf16.msra.mxu0 0
        %827 = vmatpush.bf16.msra.mxu0 %v814
        %828 = vmatpush.bf16.msra.mxu0 %v813
        %829 = vmatmul.bf16.gmra.mxu0 %v819
        %v830 = vpop.f32.mrf.mxu0
        %v831 = vadd.f32 %v803, %v830
        %v832 = vpop.f32.mrf.mxu0
        %v833 = vadd.f32 %v803, %v832
        %834 = vdwg.mxu0
        %v835 = vmul.f32 %v831, 0.25
        %v836 = vmul.f32 %v833, 0.25
        %v837 = vpack.c.bf16 %v835, %v835
        %v838 = vpack.c.bf16 %v831, %v831
        %840 = vrot.lane.b32.xlu0 %v838, 96
        %v841 = vpop.permute.xlu0 %840
        %vm842 = vcmask 130048
        %v844 = vsel %vm842, %v837, 0
        %v847 = vsel %vm842, %v841, 0
        %849 = vmatpush.bf16.xpose.msra.mxu0 0
        %850 = vmatpush.bf16.xpose.msra.mxu0 0
        %851 = vmatpush.bf16.xpose.msra.mxu0 0
        %852 = vmatpush.bf16.xpose.msra.mxu0 0
        %853 = vmatpush.bf16.xpose.msra.mxu0 0
        %854 = vmatpush.bf16.xpose.msra.mxu0 0
        %855 = vmatpush.bf16.xpose.msra.mxu0 0
        %856 = vmatpush.bf16.xpose.msra.mxu0 %v847
        %857 = vmatmul.bf16.gmra.mxu0 %v844
        %v858 = vpop.f32.mrf.mxu0
        %v859 = vadd.f32 0.0, %v858
        %v860 = vpop.f32.mrf.mxu0
        %861 = vdwg.mxu0
        %vm862 = vcmask 64512
        %v863 = vsel %vm862, %v859, -inf
        %864 = vmax.xlane.f32.xlu0 %v863
        %v865 = vpop.xlane.xlu0 %864
        %v866 = vsub.f32 %v859, %v865
        %v867 = vmul.f32 %v866, 1.442695
        %v868 = vpow.pop %v867
        %v869 = vsel %vm862, %v868, 0.0
        %870 = vadd.xlane.f32.xlu0 %v869
        %v871 = vpop.xlane.xlu0 %870
        %v872 = vrcp.pop %v871
        %v873 = vmul.f32 %v868, %v872
        %v874 = vpack.c.bf16 %v873, %v873
        %875 = vrot.lane.b32.xlu0 %v838, 64
        %v876 = vpop.permute.xlu0 %875
        %v878 = vsel %vm862, %v874, 0
        %vm880 = vcmask 1043456
        %v882 = vsel %vm880, %v876, 0
        %884 = vmatpush.bf16.msra.mxu0 0
        %885 = vmatpush.bf16.msra.mxu0 0
        %886 = vmatpush.bf16.msra.mxu0 0
        %887 = vmatpush.bf16.msra.mxu0 0
        %888 = vmatpush.bf16.msra.mxu0 0
        %889 = vmatpush.bf16.msra.mxu0 0
        %890 = vmatpush.bf16.msra.mxu0 0
        %891 = vmatpush.bf16.msra.mxu0 %v882
        %892 = vmatmul.bf16.gmra.mxu0 %v878
        %v893 = vpop.f32.mrf.mxu0
        %v894 = vadd.f32 0.0, %v893
        %v895 = vpop.f32.mrf.mxu0
        %896 = vdwg.mxu0
        %897 = vst.msk [vmem:[#allocation2] sm:$0xff] %vm842, %v894
        %899 = vrot.lane.b32.xlu0 %v837, 112
        %v900 = vpop.permute.xlu0 %899
        %901 = vrot.lane.b32.xlu0 %v838, 80
        %v902 = vpop.permute.xlu0 %901
        %v904 = vsel %vm842, %v900, 0
        %v907 = vsel %vm842, %v902, 0
        %909 = vmatpush.bf16.xpose.msra.mxu0 0
        %910 = vmatpush.bf16.xpose.msra.mxu0 0
        %911 = vmatpush.bf16.xpose.msra.mxu0 0
        %912 = vmatpush.bf16.xpose.msra.mxu0 0
        %913 = vmatpush.bf16.xpose.msra.mxu0 0
        %914 = vmatpush.bf16.xpose.msra.mxu0 0
        %915 = vmatpush.bf16.xpose.msra.mxu0 0
        %916 = vmatpush.bf16.xpose.msra.mxu0 %v907
        %917 = vmatmul.bf16.gmra.mxu0 %v904
        %v918 = vpop.f32.mrf.mxu0
        %v919 = vadd.f32 0.0, %v918
        %v920 = vpop.f32.mrf.mxu0
        %921 = vdwg.mxu0
        %v922 = vsel %vm862, %v919, -inf
        %923 = vmax.xlane.f32.xlu0 %v922
        %v924 = vpop.xlane.xlu0 %923
        %v925 = vsub.f32 %v919, %v924
        %v926 = vmul.f32 %v925, 1.442695
        %v927 = vpow.pop %v926
        %v928 = vsel %vm862, %v927, 0.0
        %929 = vadd.xlane.f32.xlu0 %v928
        %v930 = vpop.xlane.xlu0 %929
        %v931 = vrcp.pop %v930
        %v932 = vmul.f32 %v927, %v931
        %v933 = vpack.c.bf16 %v932, %v932
        %934 = vrot.lane.b32.xlu0 %v838, 48
        %v935 = vpop.permute.xlu0 %934
        %v937 = vsel %vm862, %v933, 0
        %v940 = vsel %vm880, %v935, 0
        %942 = vmatpush.bf16.msra.mxu0 0
        %943 = vmatpush.bf16.msra.mxu0 0
        %944 = vmatpush.bf16.msra.mxu0 0
        %945 = vmatpush.bf16.msra.mxu0 0
        %946 = vmatpush.bf16.msra.mxu0 0
        %947 = vmatpush.bf16.msra.mxu0 0
        %948 = vmatpush.bf16.msra.mxu0 0
        %949 = vmatpush.bf16.msra.mxu0 %v940
        %950 = vmatmul.bf16.gmra.mxu0 %v937
        %v951 = vpop.f32.mrf.mxu0
        %v952 = vadd.f32 0.0, %v951
        %v953 = vpop.f32.mrf.mxu0
        %954 = vdwg.mxu0
        %956 = vrot.lane.b32.xlu0 %v952, 16
        %v957 = vpop.permute.xlu0 %956
        %vm959 = vcmask 261248
        %960 = vst.msk [vmem:[#allocation2] sm:$0xff] %vm959, %v957
        %v961 = vpack.c.bf16 %v836, %v836
        %v962 = vpack.c.bf16 %v833, %v833
        %964 = vrot.lane.b32.xlu0 %v962, 96
        %v965 = vpop.permute.xlu0 %964
        %v967 = vsel %vm842, %v961, 0
        %v970 = vsel %vm842, %v965, 0
        %972 = vmatpush.bf16.xpose.msra.mxu0 0
        %973 = vmatpush.bf16.xpose.msra.mxu0 0
        %974 = vmatpush.bf16.xpose.msra.mxu0 0
        %975 = vmatpush.bf16.xpose.msra.mxu0 0
        %976 = vmatpush.bf16.xpose.msra.mxu0 0
        %977 = vmatpush.bf16.xpose.msra.mxu0 0
        %978 = vmatpush.bf16.xpose.msra.mxu0 0
        %979 = vmatpush.bf16.xpose.msra.mxu0 %v970
        %980 = vmatmul.bf16.gmra.mxu0 %v967
        %v981 = vpop.f32.mrf.mxu0
        %v982 = vadd.f32 0.0, %v981
        %v983 = vpop.f32.mrf.mxu0
        %984 = vdwg.mxu0
        %v985 = vsel %vm862, %v982, -inf
        %986 = vmax.xlane.f32.xlu0 %v985
        %v987 = vpop.xlane.xlu0 %986
        %v988 = vsub.f32 %v982, %v987
        %v989 = vmul.f32 %v988, 1.442695
        %v990 = vpow.pop %v989
        %v991 = vsel %vm862, %v990, 0.0
        %992 = vadd.xlane.f32.xlu0 %v991
        %v993 = vpop.xlane.xlu0 %992
        %v994 = vrcp.pop %v993
        %v995 = vmul.f32 %v990, %v994
        %v996 = vpack.c.bf16 %v995, %v995
        %997 = vrot.lane.b32.xlu0 %v962, 64
        %v998 = vpop.permute.xlu0 %997
        %v1000 = vsel %vm862, %v996, 0
        %v1003 = vsel %vm880, %v998, 0
        %1005 = vmatpush.bf16.msra.mxu0 0
        %1006 = vmatpush.bf16.msra.mxu0 0
        %1007 = vmatpush.bf16.msra.mxu0 0
        %1008 = vmatpush.bf16.msra.mxu0 0
        %1009 = vmatpush.bf16.msra.mxu0 0
        %1010 = vmatpush.bf16.msra.mxu0 0
        %1011 = vmatpush.bf16.msra.mxu0 0
        %1012 = vmatpush.bf16.msra.mxu0 %v1003
        %1013 = vmatmul.bf16.gmra.mxu0 %v1000
        %v1014 = vpop.f32.mrf.mxu0
        %v1015 = vadd.f32 0.0, %v1014
        %v1016 = vpop.f32.mrf.mxu0
        %1017 = vdwg.mxu0
        %1018 = vst.msk [vmem:[#allocation2 + $0x8] sm:$0xff] %vm842, %v1015
        %1020 = vrot.lane.b32.xlu0 %v961, 112
        %v1021 = vpop.permute.xlu0 %1020
        %1022 = vrot.lane.b32.xlu0 %v962, 80
        %v1023 = vpop.permute.xlu0 %1022
        %v1025 = vsel %vm842, %v1021, 0
        %v1028 = vsel %vm842, %v1023, 0
        %1030 = vmatpush.bf16.xpose.msra.mxu0 0
        %1031 = vmatpush.bf16.xpose.msra.mxu0 0
        %1032 = vmatpush.bf16.xpose.msra.mxu0 0
        %1033 = vmatpush.bf16.xpose.msra.mxu0 0
        %1034 = vmatpush.bf16.xpose.msra.mxu0 0
        %1035 = vmatpush.bf16.xpose.msra.mxu0 0
        %1036 = vmatpush.bf16.xpose.msra.mxu0 0
        %1037 = vmatpush.bf16.xpose.msra.mxu0 %v1028
        %1038 = vmatmul.bf16.gmra.mxu0 %v1025
        %v1039 = vpop.f32.mrf.mxu0
        %v1040 = vadd.f32 0.0, %v1039
        %v1041 = vpop.f32.mrf.mxu0
        %1042 = vdwg.mxu0
        %v1043 = vsel %vm862, %v1040, -inf
        %1044 = vmax.xlane.f32.xlu0 %v1043
        %v1045 = vpop.xlane.xlu0 %1044
        %v1046 = vsub.f32 %v1040, %v1045
        %v1047 = vmul.f32 %v1046, 1.442695
        %v1048 = vpow.pop %v1047
        %v1049 = vsel %vm862, %v1048, 0.0
        %1050 = vadd.xlane.f32.xlu0 %v1049
        %v1051 = vpop.xlane.xlu0 %1050
        %v1052 = vrcp.pop %v1051
        %v1053 = vmul.f32 %v1048, %v1052
        %v1054 = vpack.c.bf16 %v1053, %v1053
        %1055 = vrot.lane.b32.xlu0 %v962, 48
        %v1056 = vpop.permute.xlu0 %1055
        %v1058 = vsel %vm862, %v1054, 0
        %v1061 = vsel %vm880, %v1056, 0
        %1063 = vmatpush.bf16.msra.mxu0 0
        %1064 = vmatpush.bf16.msra.mxu0 0
        %1065 = vmatpush.bf16.msra.mxu0 0
        %1066 = vmatpush.bf16.msra.mxu0 0
        %1067 = vmatpush.bf16.msra.mxu0 0
        %1068 = vmatpush.bf16.msra.mxu0 0
        %1069 = vmatpush.bf16.msra.mxu0 0
        %1070 = vmatpush.bf16.msra.mxu0 %v1061
        %1071 = vmatmul.bf16.gmra.mxu0 %v1058
        %v1072 = vpop.f32.mrf.mxu0
        %v1073 = vadd.f32 0.0, %v1072
        %v1074 = vpop.f32.mrf.mxu0
        %1075 = vdwg.mxu0
        %1077 = vrot.lane.b32.xlu0 %v1073, 16
        %v1078 = vpop.permute.xlu0 %1077
        %1080 = vst.msk [vmem:[#allocation2 + $0x8] sm:$0xff] %vm959, %v1078
        %v1081 = vld [vmem:[#allocation2] sm:$0xff]
        %v1082 = vld [vmem:[#allocation2 + $0x8] sm:$0xff]
        %v1083 = vld [vmem:[%s695] sm:$0xf]
        %v1084 = vld [vmem:[%s695 + $0x4] sm:$0xf]
        %v1085 = vld [vmem:[%s695 + $0x8] sm:$0xf]
        %v1086 = vld [vmem:[%s695 + $0xc] sm:$0xf]
        %v1087 = vld [vmem:[%s698] sm:$0x1]
        %v1088 = vpack.c.bf16 %v1082, %v1081
        %v1090 = vperm.slane %v1087, 0
        %v1096 = vunpack.c.l.b16 %v1083
        %v1097 = vunpack.c.l.b16 %v1084
        %v1098 = vunpack.c.l.b16 %v1085
        %v1099 = vunpack.c.l.b16 %v1086
        %v1100 = vpack.c.b16 %v1097, %v1096
        %v1101 = vpack.c.b16 %v1099, %v1098
        %v1105 = vsel %vm817, %v1088, 0
        %1107 = vmatpush.bf16.msra.mxu0 0
        %1108 = vmatpush.bf16.msra.mxu0 0
        %1109 = vmatpush.bf16.msra.mxu0 0
        %1110 = vmatpush.bf16.msra.mxu0 0
        %1111 = vmatpush.bf16.msra.mxu0 0
        %1112 = vmatpush.bf16.msra.mxu0 0
        %1113 = vmatpush.bf16.msra.mxu0 %v1101
        %1114 = vmatpush.bf16.msra.mxu0 %v1100
        %1115 = vmatmul.bf16.gmra.mxu0 %v1105
        %v1116 = vpop.f32.mrf.mxu0
        %v1117 = vadd.f32 %v1090, %v1116
        %v1118 = vpop.f32.mrf.mxu0
        %v1119 = vadd.f32 %v1090, %v1118
        %1120 = vdwg.mxu0
        %v1121 = vadd.f32 %v794, %v1117
        %v1122 = vadd.f32 %v795, %v1119
        %v1123 = vld [vmem:[%s590] sm:$0x1]
        %v1124 = vld [vmem:[%s701] sm:$0x1]
        %v1125 = vsel %vm817, %v1121, 0.0
        %1126 = vadd.xlane.f32.xlu0 %v1125
        %v1127 = vpop.xlane.xlu0 %1126
        %v1128 = vsel %vm817, %v1122, 0.0
        %1129 = vadd.xlane.f32.xlu0 %v1128
        %v1130 = vpop.xlane.xlu0 %1129
        %v1131 = vrcp.pop 32.0
        %v1132 = vmul.f32 32.0, %v1131
        %v1133 = vsub.f32 1.0, %v1132
        %v1134 = vmul.f32 %v1131, %v1133
        %v1135 = vadd.f32 %v1131, %v1134
        %vm1136 = vweird.f32 %v1131
        %v1137 = vsel %vm1136, %v1131, %v1135
        %v1138 = vmul.f32 %v1127, %v1137
        %v1139 = vmul.f32 %v1130, %v1137
        %v1140 = vsub.f32 %v1121, %v1138
        %v1141 = vsub.f32 %v1122, %v1139
        %v1142 = vmul.f32 %v1140, %v1140
        %v1143 = vmul.f32 %v1141, %v1141
        %v1144 = vsel %vm817, %v1142, 0.0
        %1145 = vadd.xlane.f32.xlu0 %v1144
        %v1146 = vpop.xlane.xlu0 %1145
        %v1147 = vsel %vm817, %v1143, 0.0
        %1148 = vadd.xlane.f32.xlu0 %v1147
        %v1149 = vpop.xlane.xlu0 %1148
        %v1150 = vmul.f32 %v1146, %v1137
        %v1151 = vmul.f32 %v1149, %v1137
        %v1152 = vadd.f32 %v1150, 1e-12
        %v1153 = vadd.f32 %v1151, 1e-12
        %v1154 = vrsqrt.pop %v1152
        %v1155 = vmul.f32 %v1154, %v1152
        %v1156 = vmul.f32 %v1155, %v1154
        %v1157 = vmul.f32 0.5, %v1156
        %v1158 = vsub.f32 1.5, %v1157
        %v1159 = vmul.f32 %v1154, %v1158
        %vm1160 = vweird.f32 %v1152
        %vm1161 = vweird.f32 %v1154
        %vm1162 = vmor %vm1160, %vm1161
        %v1163 = vsel %vm1162, %v1154, %v1159
        %v1164 = vrsqrt.pop %v1153
        %v1165 = vmul.f32 %v1164, %v1153
        %v1166 = vmul.f32 %v1165, %v1164
        %v1167 = vmul.f32 0.5, %v1166
        %v1168 = vsub.f32 1.5, %v1167
        %v1169 = vmul.f32 %v1164, %v1168
        %vm1170 = vweird.f32 %v1153
        %vm1171 = vweird.f32 %v1164
        %vm1172 = vmor %vm1170, %vm1171
        %v1173 = vsel %vm1172, %v1164, %v1169
        %v1174 = vmul.f32 %v1140, %v1163
        %v1175 = vmul.f32 %v1141, %v1173
        %v1177 = vperm.slane %v1123, 0
        %v1179 = vmul.f32 %v1174, %v1177
        %v1180 = vmul.f32 %v1175, %v1177
        %v1182 = vperm.slane %v1124, 0
        %v1184 = vadd.f32 %v1179, %v1182
        %v1185 = vadd.f32 %v1180, %v1182
        %v1186 = vld [vmem:[%s706] sm:$0xf]
        %v1187 = vld [vmem:[%s706 + $0x4] sm:$0xf]
        %v1188 = vld [vmem:[%s706 + $0x8] sm:$0xf]
        %v1189 = vld [vmem:[%s706 + $0xc] sm:$0xf]
        %v1190 = vld [vmem:[%s709] sm:$0x1]
        %v1191 = vpack.c.bf16 %v1185, %v1184
        %v1193 = vperm.slane %v1190, 0
        %v1199 = vunpack.c.l.b16 %v1186
        %v1200 = vunpack.c.l.b16 %v1187
        %v1201 = vunpack.c.l.b16 %v1188
        %v1202 = vunpack.c.l.b16 %v1189
        %v1203 = vpack.c.b16 %v1200, %v1199
        %v1204 = vpack.c.b16 %v1202, %v1201
        %v1208 = vsel %vm817, %v1191, 0
        %1210 = vmatpush.bf16.msra.mxu0 0
        %1211 = vmatpush.bf16.msra.mxu0 0
        %1212 = vmatpush.bf16.msra.mxu0 0
        %1213 = vmatpush.bf16.msra.mxu0 0
        %1214 = vmatpush.bf16.msra.mxu0 0
        %1215 = vmatpush.bf16.msra.mxu0 0
        %1216 = vmatpush.bf16.msra.mxu0 %v1204
        %1217 = vmatpush.bf16.msra.mxu0 %v1203
        %1218 = vmatmul.bf16.gmra.mxu0 %v1208
        %v1219 = vpop.f32.mrf.mxu0
        %v1220 = vadd.f32 %v1193, %v1219
        %v1221 = vpop.f32.mrf.mxu0
        %v1222 = vadd.f32 %v1193, %v1221
        %1223 = vdwg.mxu0
        %v1224 = vmul.f32 %v1220, 0.5
        %v1225 = vmul.f32 %v1222, 0.5
        %v1226 = vmul.f32 %v1220, 0.044715
        %v1227 = vmul.f32 %v1222, 0.044715
        %v1228 = vmul.f32 %v1226, %v1220
        %v1229 = vmul.f32 %v1227, %v1222
        %v1230 = vmul.f32 %v1228, %v1220
        %v1231 = vmul.f32 %v1229, %v1222
        %v1232 = vadd.f32 %v1220, %v1230
        %v1233 = vadd.f32 %v1222, %v1231
        %v1234 = vmul.f32 %v1232, 0.7978846
        %v1235 = vmul.f32 %v1233, 0.7978846
        %v1236 = vtanh.pop %v1234
        %v1237 = vtanh.pop %v1235
        %v1238 = vadd.f32 %v1236, 1.0
        %v1239 = vadd.f32 %v1237, 1.0
        %v1240 = vmul.f32 %v1224, %v1238
        %v1241 = vmul.f32 %v1225, %v1239
        %v1242 = vld [vmem:[%s714] sm:$0xf]
        %v1243 = vld [vmem:[%s714 + $0x4] sm:$0xf]
        %v1244 = vld [vmem:[%s714 + $0x8] sm:$0xf]
        %v1245 = vld [vmem:[%s714 + $0xc] sm:$0xf]
        %v1246 = vld [vmem:[%s714 + $0x10] sm:$0xf]
        %v1247 = vld [vmem:[%s714 + $0x14] sm:$0xf]
        %v1248 = vld [vmem:[%s714 + $0x18] sm:$0xf]
        %v1249 = vld [vmem:[%s714 + $0x1c] sm:$0xf]
        %v1250 = vld [vmem:[%s717] sm:$0x1]
        %v1251 = vpack.c.bf16 %v1241, %v1240
        %v1253 = vperm.slane %v1250, 0
        %v1263 = vunpack.c.l.b16 %v1242
        %v1264 = vunpack.c.l.b16 %v1243
        %v1265 = vunpack.c.l.b16 %v1244
        %v1266 = vunpack.c.l.b16 %v1245
        %v1267 = vunpack.c.l.b16 %v1246
        %v1268 = vunpack.c.l.b16 %v1247
        %v1269 = vunpack.c.l.b16 %v1248
        %v1270 = vunpack.c.l.b16 %v1249
        %v1271 = vpack.c.b16 %v1264, %v1263
        %v1272 = vpack.c.b16 %v1266, %v1265
        %v1273 = vpack.c.b16 %v1268, %v1267
        %v1274 = vpack.c.b16 %v1270, %v1269
        %vm1279 = vcmask 523264
        %v1281 = vsel %vm1279, %v1251, 0
        %1283 = vmatpush.bf16.msra.mxu0 0
        %1284 = vmatpush.bf16.msra.mxu0 0
        %1285 = vmatpush.bf16.msra.mxu0 0
        %1286 = vmatpush.bf16.msra.mxu0 0
        %1287 = vmatpush.bf16.msra.mxu0 %v1274
        %1288 = vmatpush.bf16.msra.mxu0 %v1273
        %1289 = vmatpush.bf16.msra.mxu0 %v1272
        %1290 = vmatpush.bf16.msra.mxu0 %v1271
        %1291 = vmatmul.bf16.gmra.mxu0 %v1281
        %v1292 = vpop.f32.mrf.mxu0
        %v1293 = vadd.f32 %v1253, %v1292
        %v1294 = vpop.f32.mrf.mxu0
        %v1295 = vadd.f32 %v1253, %v1294
        %1296 = vdwg.mxu0
        %v1297 = vadd.f32 %v1184, %v1293
        %v1298 = vadd.f32 %v1185, %v1295
        %v1299 = vld [vmem:[%s599] sm:$0x1]
        %v1300 = vld [vmem:[%s720] sm:$0x1]
        %v1301 = vsel %vm817, %v1297, 0.0
        %1302 = vadd.xlane.f32.xlu0 %v1301
        %v1303 = vpop.xlane.xlu0 %1302
        %v1304 = vsel %vm817, %v1298, 0.0
        %1305 = vadd.xlane.f32.xlu0 %v1304
        %v1306 = vpop.xlane.xlu0 %1305
        %v1307 = vmul.f32 %v1303, %v1137
        %v1308 = vmul.f32 %v1306, %v1137
        %v1309 = vsub.f32 %v1297, %v1307
        %v1310 = vsub.f32 %v1298, %v1308
        %v1311 = vmul.f32 %v1309, %v1309
        %v1312 = vmul.f32 %v1310, %v1310
        %v1313 = vsel %vm817, %v1311, 0.0
        %1314 = vadd.xlane.f32.xlu0 %v1313
        %v1315 = vpop.xlane.xlu0 %1314
        %v1316 = vsel %vm817, %v1312, 0.0
        %1317 = vadd.xlane.f32.xlu0 %v1316
        %v1318 = vpop.xlane.xlu0 %1317
        %v1319 = vmul.f32 %v1315, %v1137
        %v1320 = vmul.f32 %v1318, %v1137
        %v1321 = vadd.f32 %v1319, 1e-12
        %v1322 = vadd.f32 %v1320, 1e-12
        %v1323 = vrsqrt.pop %v1321
        %v1324 = vmul.f32 %v1323, %v1321
        %v1325 = vmul.f32 %v1324, %v1323
        %v1326 = vmul.f32 0.5, %v1325
        %v1327 = vsub.f32 1.5, %v1326
        %v1328 = vmul.f32 %v1323, %v1327
        %vm1329 = vweird.f32 %v1321
        %vm1330 = vweird.f32 %v1323
        %vm1331 = vmor %vm1329, %vm1330
        %v1332 = vsel %vm1331, %v1323, %v1328
        %v1333 = vrsqrt.pop %v1322
        %v1334 = vmul.f32 %v1333, %v1322
        %v1335 = vmul.f32 %v1334, %v1333
        %v1336 = vmul.f32 0.5, %v1335
        %v1337 = vsub.f32 1.5, %v1336
        %v1338 = vmul.f32 %v1333, %v1337
        %vm1339 = vweird.f32 %v1322
        %vm1340 = vweird.f32 %v1333
        %vm1341 = vmor %vm1339, %vm1340
        %v1342 = vsel %vm1341, %v1333, %v1338
        %v1343 = vmul.f32 %v1309, %v1332
        %v1344 = vmul.f32 %v1310, %v1342
        %v1346 = vperm.slane %v1299, 0
        %v1348 = vmul.f32 %v1343, %v1346
        %v1349 = vmul.f32 %v1344, %v1346
        %v1351 = vperm.slane %v1300, 0
        %v1353 = vadd.f32 %v1348, %v1351
        %v1354 = vadd.f32 %v1349, %v1351
        %1355 = vst.msk [vmem:[#allocation3] sm:$0xff] %vm817, %v1353
        %1356 = vst.msk [vmem:[#allocation3 + $0x8] sm:$0xff] %vm817, %v1354
        %1357 = vst.msk [vmem:[#allocation11] sm:$0xff] %vm817, %v1353
        %1358 = vst.msk [vmem:[#allocation11 + $0x8] sm:$0xff] %vm817, %v1354
        // Predicated region
        $region101: #{tpu_custom_call.1} parent=79 // pred_check
          %p1359 = pneg %p417
        $region102: #{tpu_custom_call.1} parent=79 // pred_check_branch
          %1361 = sbr.rel (%p1359) target = $region104
        $region103: #{tpu_custom_call.1} parent=79 // pred_region
          %1363 = vsyncadd [#allocation6], 0
          %s1364 = sshll.u32 [#allocation11], 4
          %s1365 = int_to_ptr.vmem [resolvable:$true] %s1364
          %s1366 = sshll.u32 %s15, 4
          %s1367 = int_to_ptr.hbm [resolvable:$true] %s1366
          %1372 = dma.vmem_to_hbm [thread:$0]  %s1365, 256, %s1367, [#allocation6], 128, 128, 8
        $region104: #{tpu_custom_call.1} parent=79 // pred_fallthru
          _
        // Predicated region
        $region105: #{tpu_custom_call.1} parent=79 // pred_check
          %p1373 = pneg %p417
        $region106: #{tpu_custom_call.1} parent=79 // pred_check_branch
          %1375 = sbr.rel (%p1373) target = $region108
        $region107: #{tpu_custom_call.1} parent=79 // pred_region
          %1377 = dma.done [#allocation6], 256
        $region108: #{tpu_custom_call.1} parent=79 // pred_fallthru
          _
      $region80: #{tpu_custom_call.1} parent=5 // pred_fallthru
        _
      %p1378 = scmp.le.s32.totalorder 2, %s24
      // Predicated region
      $region109: #{tpu_custom_call.1} parent=5 // pred_check
        %p1379 = pneg %p1378
      $region110: #{tpu_custom_call.1} parent=5 // pred_check_branch
        %1381 = sbr.rel (%p1379) target = $region112
      $region111: #{tpu_custom_call.1} parent=5 // pred_region
        %s1382 = ssub.s32 %s24, 2
      $region112: #{tpu_custom_call.1} parent=5 // pred_fallthru
        _
    $region6: #{tpu_custom_call.1} parent=1 // loop_footer
      %s28 = sadd.s32 1, %s24
    $region7: #{tpu_custom_call.1} parent=1 // loop_footer_branch
      %23 = sbr.rel target = $region3
    $region8: #{tpu_custom_call.1} parent=1 // loop_exit
      _
    %1383 = vsyncpa [#allocation5], 1
    %s1384 = scalar_lea.sflag [#allocation5], 1
    %1385 = vsyncpa %s1384, 1
    %1386 = vsyncpa [#allocation8], 1
    %1387 = vsyncpa [#allocation6], 1
    %s1388 = scalar_lea.sflag [#allocation6], 1
    %1389 = vsyncpa %s1388, 1

</llo_original>
